<compile_context>
chip_gen: v7x
topology: tpu7x:2x2x1
jax: 0.10.0
libtpu: 0.0.40
codegen_flags: <defaults>
</compile_context>

<pallas_src>
import math

import jax
import jax.numpy as jnp
from jax.experimental import pallas as pl
from jax.experimental.pallas import tpu as pltpu

# ----------------------------- synthetic config -----------------------------
VOCAB = 64                 # synthetic vocab; last id is the <EMBED> token
VOCAB_PAD = 128            # lane-dense one-hot / MXU K dimension
HIDDEN = 128               # lane-dense (TPU lane width)
FFN = 256
SEQ = 8                    # input sequence length before compress tokens
NUM_COMPRESS = 2           # num_compress_token
PAD_ID = 0                 # tokenizer.pad_token_id
EMBED_TOKEN_ID = VOCAB - 1 # tokenizer.convert_tokens_to_ids('<EMBED>')
TEMPERATURE = 1.0
SIM_METHOD = "cos"
NORMALIZED = False


def _l2_normalize(x):
    # F.normalize(dim=-1): x / max(||x||, eps); rsqrt keeps the divide on the EUP.
    return x * jax.lax.rsqrt(jnp.maximum(jnp.sum(x * x, axis=-1, keepdims=True), 1e-24))


# --------------------------- fully fused forward kernel ---------------------
def make_forward_kernel(hidden, bq, bp, group_size, temperature, method, normalized):
    apply_temp = (temperature != 1.0)
    inv_temp = 1.0 / temperature
    b_total = bq + bp

    def kernel(ids_ref, ex_row_ref, ex_col_ref, keym_ref, gw_ref, tbl_ref,
               wqkv_ref, wo_ref, w1_ref, w2_ref,
               loss_ref, scores_ref, qreps_ref, preps_ref):
        n = ids_ref.shape[0]
        vocab = tbl_ref.shape[0]
        h = hidden

        # ---- embedding lookup as a one-hot matmul (exact f32, lane-dense V=128) ----
        onehot = (ids_ref[...] ==
                  jax.lax.broadcasted_iota(jnp.int32, (n, vocab), 1)).astype(jnp.float32)
        x = jnp.dot(onehot, tbl_ref[...], preferred_element_type=jnp.float32)   # (N, H)

        # ---- fused QKV: one (N,H)@(H,3H) bf16 MXU matmul; 1/sqrt(H) folded in Wq ----
        qkv = jnp.dot(x.astype(jnp.bfloat16), wqkv_ref[...],
                      preferred_element_type=jnp.float32)                        # (N, 3H)
        q = qkv[:, :h]
        k = qkv[:, h:2 * h]
        v = qkv[:, 2 * h:]

        # ---- masked self-attention; block-diagonal mask built in-kernel ----
        s = jax.lax.dot_general(
            q.astype(jnp.bfloat16), k.astype(jnp.bfloat16),
            (((1,), (1,)), ((), ())),              # contract last dims; no transpose
            preferred_element_type=jnp.float32)                                  # (N, N)
        valid = (ex_row_ref[...] == ex_col_ref[...]) & (keym_ref[...] > 0)
        s = jnp.where(valid, s, -1e9)
        s = s - jnp.max(s, axis=-1, keepdims=True)
        p = jnp.exp(s)                              # unnormalized, <= 1 -> bf16-safe
        attn = jnp.dot(p.astype(jnp.bfloat16), v.astype(jnp.bfloat16),
                       preferred_element_type=jnp.float32)                       # (N, H)
        attn = attn * pl.reciprocal(jnp.sum(p, axis=-1, keepdims=True), approx=True)

        hres = x + jnp.dot(attn.astype(jnp.bfloat16), wo_ref[...],
                           preferred_element_type=jnp.float32)
        ffn = jnp.dot(
            jnp.tanh(jnp.dot(hres.astype(jnp.bfloat16), w1_ref[...],
                             preferred_element_type=jnp.float32)).astype(jnp.bfloat16),
            w2_ref[...], preferred_element_type=jnp.float32)
        hid = hres + ffn                                                          # (N, H)

        # ---- fused <EMBED>-token gather + mean: ONE (B,N)@(N,H) matmul (exact f32) ----
        rows_b = jax.lax.broadcasted_iota(jnp.int32, (b_total, n), 0)
        gmat = jnp.where(rows_b == ex_col_ref[...], gw_ref[...], 0.0)             # (B, N)
        reps = jnp.dot(gmat, hid, preferred_element_type=jnp.float32)             # (B, H)
        q_reps = reps[:bq]
        p_reps = reps[bq:bq + bp]
        if normalized:
            q_reps = _l2_normalize(q_reps)
            p_reps = _l2_normalize(p_reps)
        qreps_ref[...] = q_reps
        preps_ref[...] = p_reps

        # ---- similarity ----
        if method == "cos":
            qs = _l2_normalize(q_reps)
            ps = _l2_normalize(p_reps)
        else:
            qs, ps = q_reps, p_reps
        scores = jax.lax.dot_general(
            qs, ps, (((1,), (1,)), ((), ())),
            preferred_element_type=jnp.float32)                                   # (Bq, Bp)
        if apply_temp:
            scores = scores * inv_temp
        scores_ref[...] = scores

        # ---- in-batch-negative cross entropy, target = arange(Bq) * group_size ----
        m = jnp.max(scores, axis=-1, keepdims=True)
        lse = m + jnp.log(jnp.sum(jnp.exp(scores - m), axis=-1, keepdims=True))
        rows = jax.lax.broadcasted_iota(jnp.int32, scores.shape, 0)
        cols = jax.lax.broadcasted_iota(jnp.int32, scores.shape, 1)
        tgt = jnp.sum(jnp.where(cols == rows * group_size, scores, 0.0),
                      axis=-1, keepdims=True)
        loss_ref[0, 0] = jnp.sum(lse - tgt) * (1.0 / bq)

    return kernel


# ------------------------------- glue (JAX) ---------------------------------
def build_compress_inputs(input_ids, attention_mask):
    """Mirror _compress(): append pad slots, place <EMBED> ids at lengths+i, build
    attention mask, and a per-position weight (1/T at each <EMBED> slot) used for
    the in-kernel gather/mean pooling matrix."""
    B, S = input_ids.shape
    T = NUM_COMPRESS
    S_tot = S + T
    lengths = jnp.sum(attention_mask, axis=1).astype(jnp.int32)
    padded_ids = jnp.concatenate(
        [input_ids, jnp.full((B, T), PAD_ID, jnp.int32)], axis=1)
    padded_mask = jnp.concatenate(
        [attention_mask, jnp.zeros((B, T), jnp.int32)], axis=1)
    pos = jnp.arange(S_tot, dtype=jnp.int32)[None, :]
    off = pos - lengths[:, None]
    is_embed = (off >= 0) & (off < T)
    embedding_ids = jnp.where(is_embed, EMBED_TOKEN_ID, padded_ids).astype(jnp.int32)
    embedding_mask = jnp.where(is_embed, 1, padded_mask).astype(jnp.int32)
    gather_w = is_embed.astype(jnp.float32) / float(T)        # rows sum to 1 -> mean
    return embedding_ids, embedding_mask, gather_w


def forward(query, passage, embed_table, enc_params):
    q_ids, q_mask = query["input_ids"], query["attention_mask"]
    p_ids, p_mask = passage["input_ids"], passage["attention_mask"]
    Bq, S = q_ids.shape
    Bp = p_ids.shape[0]
    assert Bp % Bq == 0, "use_inbatch_neg CE requires Bp to be a multiple of Bq"
    B = Bq + Bp
    T = NUM_COMPRESS
    S_tot = S + T
    N = B * S_tot
    N_pad = ((N + 7) // 8) * 8          # sublane-aligned flattened row count
    pad = N_pad - N

    # One fused encode for query + passage (queries first, then passages, so the
    # CE target layout arange(Bq)*group_size is preserved).
    ids = jnp.concatenate([q_ids, p_ids], axis=0)
    mask = jnp.concatenate([q_mask, p_mask], axis=0)
    emb_ids, emb_mask, gather_w = build_compress_inputs(ids, mask)

    # Tiny per-row vectors (the kernel rebuilds the block-diagonal attention mask
    # and the pooling matrix from these — no (N,N) / (B,N) DMA).
    ids_flat = jnp.concatenate(
        [emb_ids.reshape(N), jnp.full((pad,), PAD_ID, jnp.int32)]).reshape(N_pad, 1)
    ex = jnp.concatenate(
        [jnp.arange(N, dtype=jnp.int32) // S_tot, jnp.full((pad,), -1, jnp.int32)])
    keym = jnp.concatenate(
        [emb_mask.reshape(N).astype(jnp.int32), jnp.zeros((pad,), jnp.int32)])
    gw = jnp.concatenate(
        [gather_w.reshape(N), jnp.zeros((pad,), jnp.float32)])

    group_size = Bp // Bq
    kernel = make_forward_kernel(HIDDEN, Bq, Bp, group_size,
                                 TEMPERATURE, SIM_METHOD, NORMALIZED)
    vmem = pl.BlockSpec(memory_space=pltpu.MemorySpace.VMEM)
    smem = pl.BlockSpec(memory_space=pltpu.MemorySpace.SMEM)
    loss, scores, q_reps, p_reps = pl.pallas_call(
        kernel,
        out_shape=(jax.ShapeDtypeStruct((1, 1), jnp.float32),         # loss (SMEM)
                   jax.ShapeDtypeStruct((Bq, Bp), jnp.float32),       # scores
                   jax.ShapeDtypeStruct((Bq, HIDDEN), jnp.float32),   # q_reps
                   jax.ShapeDtypeStruct((Bp, HIDDEN), jnp.float32)),  # p_reps
        in_specs=[vmem] * 10,
        out_specs=(smem, vmem, vmem, vmem),
    )(ids_flat, ex.reshape(N_pad, 1), ex.reshape(1, N_pad),
      keym.reshape(1, N_pad), gw.reshape(1, N_pad),
      embed_table, *enc_params)
    return {"loss": loss[0, 0], "scores": scores, "q_reps": q_reps, "p_reps": p_reps}


# --------------------------------- main --------------------------------------
def make_features(key, batch, seq):
    k_len, k_tok = jax.random.split(key)
    lengths = jax.random.randint(k_len, (batch,), 3, seq + 1)
    mask = (jnp.arange(seq)[None, :] < lengths[:, None]).astype(jnp.int32)
    ids = jax.random.randint(k_tok, (batch, seq), 1, EMBED_TOKEN_ID).astype(jnp.int32)
    ids = jnp.where(mask > 0, ids, PAD_ID)
    return {"input_ids": ids, "attention_mask": mask}


if __name__ == "__main__":
    key = jax.random.PRNGKey(0)
    keys = jax.random.split(key, 8)

    # deterministic synthetic parameters (shapes implied by the module's config)
    embed_table = jax.random.normal(keys[0], (VOCAB, HIDDEN), jnp.float32) * 0.02
    # pad vocab dimension to 128 for a lane-dense one-hot / MXU contraction
    embed_table = jnp.concatenate(
        [embed_table, jnp.zeros((VOCAB_PAD - VOCAB, HIDDEN), jnp.float32)], axis=0)

    scale = 1.0 / math.sqrt(HIDDEN)
    wqkv = jax.random.normal(keys[1], (HIDDEN, 3 * HIDDEN), jnp.float32) * scale
    # fold the attention 1/sqrt(H) score scale into the Q output columns
    wqkv = wqkv.at[:, :HIDDEN].multiply(1.0 / math.sqrt(HIDDEN))
    enc_params = (
        wqkv.astype(jnp.bfloat16),                                                # fused Wqkv
        (jax.random.normal(keys[2], (HIDDEN, HIDDEN), jnp.float32) * scale
         ).astype(jnp.bfloat16),                                                  # Wo
        (jax.random.normal(keys[3], (HIDDEN, FFN), jnp.float32) * scale
         ).astype(jnp.bfloat16),                                                  # W1
        (jax.random.normal(keys[4], (FFN, HIDDEN), jnp.float32)
         * (1.0 / math.sqrt(FFN))).astype(jnp.bfloat16),                          # W2
    )

    query = make_features(keys[5], batch=2, seq=SEQ)       # 2 queries
    passage = make_features(keys[6], batch=4, seq=SEQ)     # 4 passages (group_size=2)

    fwd = jax.jit(forward)
    out = fwd(query, passage, embed_table, enc_params)
    jax.block_until_ready(out)

    assert out["scores"].shape == (2, 4)
    assert out["q_reps"].shape == (2, HIDDEN)
    assert out["p_reps"].shape == (4, HIDDEN)
    assert out["loss"].shape == ()
    assert bool(jnp.isfinite(out["loss"]))
    print("KERNEL_OK")
</pallas_src>

<mosaic_0001>
module attributes {stable_mosaic.version = 11 : i64} {
  func.func @kernel(%arg0: memref<64x1xi32, #tpu.memory_space<vmem>>, %arg1: memref<64x1xi32, #tpu.memory_space<vmem>>, %arg2: memref<1x64xi32, #tpu.memory_space<vmem>>, %arg3: memref<1x64xi32, #tpu.memory_space<vmem>>, %arg4: memref<1x64xf32, #tpu.memory_space<vmem>>, %arg5: memref<128x128xf32, #tpu.memory_space<vmem>>, %arg6: memref<128x384xbf16, #tpu.memory_space<vmem>>, %arg7: memref<128x128xbf16, #tpu.memory_space<vmem>>, %arg8: memref<128x256xbf16, #tpu.memory_space<vmem>>, %arg9: memref<256x128xbf16, #tpu.memory_space<vmem>>, %arg10: memref<1x1xf32, #tpu.memory_space<smem>>, %arg11: memref<2x4xf32, #tpu.memory_space<vmem>>, %arg12: memref<2x128xf32, #tpu.memory_space<vmem>>, %arg13: memref<4x128xf32, #tpu.memory_space<vmem>>) attributes {dimension_semantics = [], scalar_prefetch = 0 : i64, scratch_operands = 0 : i64, tpu.core_type = #tpu.core_type<tc>} {
    %c0 = arith.constant 0 : index
    %c0_0 = arith.constant 0 : index
    %0 = vector.load %arg0[%c0, %c0_0] : memref<64x1xi32, #tpu.memory_space<vmem>>, vector<64x1xi32>
    %1 = tpu.iota {dimensions = array<i32: 1>} : vector<64x128xi32>
    %2 = vector.broadcast %0 : vector<64x1xi32> to vector<64x128xi32>
    %3 = arith.cmpi eq, %2, %1 : vector<64x128xi32>
    %4 = arith.extui %3 : vector<64x128xi1> to vector<64x128xi32>
    %5 = arith.sitofp %4 : vector<64x128xi32> to vector<64x128xf32>
    %c0_1 = arith.constant 0 : index
    %c0_2 = arith.constant 0 : index
    %6 = vector.load %arg5[%c0_1, %c0_2] : memref<128x128xf32, #tpu.memory_space<vmem>>, vector<128x128xf32>
    %cst = arith.constant dense<0.000000e+00> : vector<64x128xf32>
    %7 = tpu.matmul %5, %6, %cst {dimension_numbers = #tpu.dot_dimension_numbers<[1], [0], [0], [1], [0, 0, 1, 1], [], []>} : vector<64x128xf32>, vector<128x128xf32>, vector<64x128xf32> -> vector<64x128xf32>
    %8 = arith.truncf %7 : vector<64x128xf32> to vector<64x128xbf16>
    %c0_3 = arith.constant 0 : index
    %c0_4 = arith.constant 0 : index
    %9 = vector.load %arg6[%c0_3, %c0_4] : memref<128x384xbf16, #tpu.memory_space<vmem>>, vector<128x384xbf16>
    %cst_5 = arith.constant dense<0.000000e+00> : vector<64x384xf32>
    %10 = tpu.matmul %8, %9, %cst_5 {dimension_numbers = #tpu.dot_dimension_numbers<[1], [0], [0], [1], [0, 0, 1, 1], [], []>} : vector<64x128xbf16>, vector<128x384xbf16>, vector<64x384xf32> -> vector<64x384xf32>
    %11 = vector.extract_strided_slice %10 {offsets = [0, 0], sizes = [64, 128], strides = [1, 1]} : vector<64x384xf32> to vector<64x128xf32>
    %12 = vector.extract_strided_slice %10 {offsets = [0, 128], sizes = [64, 128], strides = [1, 1]} : vector<64x384xf32> to vector<64x128xf32>
    %13 = vector.extract_strided_slice %10 {offsets = [0, 256], sizes = [64, 128], strides = [1, 1]} : vector<64x384xf32> to vector<64x128xf32>
    %14 = arith.truncf %11 : vector<64x128xf32> to vector<64x128xbf16>
    %15 = arith.truncf %12 : vector<64x128xf32> to vector<64x128xbf16>
    %cst_6 = arith.constant dense<0.000000e+00> : vector<64x64xf32>
    %16 = tpu.matmul %14, %15, %cst_6 {dimension_numbers = #tpu.dot_dimension_numbers<[1], [1], [0], [0], [0, 0, 1, 0], [], []>} : vector<64x128xbf16>, vector<64x128xbf16>, vector<64x64xf32> -> vector<64x64xf32>
    %c0_7 = arith.constant 0 : index
    %c0_8 = arith.constant 0 : index
    %17 = vector.load %arg1[%c0_7, %c0_8] : memref<64x1xi32, #tpu.memory_space<vmem>>, vector<64x1xi32>
    %c0_9 = arith.constant 0 : index
    %c0_10 = arith.constant 0 : index
    %18 = vector.load %arg2[%c0_9, %c0_10] : memref<1x64xi32, #tpu.memory_space<vmem>>, vector<1x64xi32>
    %19 = vector.broadcast %17 : vector<64x1xi32> to vector<64x64xi32>
    %20 = vector.broadcast %18 : vector<1x64xi32> to vector<64x64xi32>
    %21 = arith.cmpi eq, %19, %20 : vector<64x64xi32>
    %c0_11 = arith.constant 0 : index
    %c0_12 = arith.constant 0 : index
    %22 = vector.load %arg3[%c0_11, %c0_12] : memref<1x64xi32, #tpu.memory_space<vmem>>, vector<1x64xi32>
    %c0_i32 = arith.constant 0 : i32
    %23 = vector.broadcast %c0_i32 : i32 to vector<1x64xi32>
    %24 = arith.cmpi sgt, %22, %23 : vector<1x64xi32>
    %25 = vector.broadcast %24 : vector<1x64xi1> to vector<64x64xi1>
    %26 = arith.andi %21, %25 : vector<64x64xi1>
    %cst_13 = arith.constant -1.000000e+09 : f32
    %27 = vector.broadcast %cst_13 : f32 to vector<64x64xf32>
    %28 = arith.select %26, %16, %27 : vector<64x64xi1>, vector<64x64xf32>
    %cst_14 = arith.constant dense<0xFF800000> : vector<64xf32>
    %29 = vector.multi_reduction <maximumf>, %28, %cst_14 [1] : vector<64x64xf32> to vector<64xf32>
    %30 = vector.shape_cast %29 : vector<64xf32> to vector<64x1xf32>
    %31 = vector.broadcast %30 : vector<64x1xf32> to vector<64x64xf32>
    %32 = arith.subf %28, %31 : vector<64x64xf32>
    %33 = math.exp %32 : vector<64x64xf32>
    %34 = arith.truncf %33 : vector<64x64xf32> to vector<64x64xbf16>
    %35 = arith.truncf %13 : vector<64x128xf32> to vector<64x128xbf16>
    %cst_15 = arith.constant dense<0.000000e+00> : vector<64x128xf32>
    %36 = tpu.matmul %34, %35, %cst_15 {dimension_numbers = #tpu.dot_dimension_numbers<[1], [0], [0], [1], [0, 0, 1, 1], [], []>} : vector<64x64xbf16>, vector<64x128xbf16>, vector<64x128xf32> -> vector<64x128xf32>
    %cst_16 = arith.constant dense<0.000000e+00> : vector<64xf32>
    %37 = vector.multi_reduction <add>, %33, %cst_16 [1] : vector<64x64xf32> to vector<64xf32>
    %38 = vector.shape_cast %37 : vector<64xf32> to vector<64x1xf32>
    %39 = tpu.reciprocal %38 {approx = true} : vector<64x1xf32> -> vector<64x1xf32>
    %40 = vector.broadcast %39 : vector<64x1xf32> to vector<64x128xf32>
    %41 = arith.mulf %36, %40 : vector<64x128xf32>
    %42 = arith.truncf %41 : vector<64x128xf32> to vector<64x128xbf16>
    %c0_17 = arith.constant 0 : index
    %c0_18 = arith.constant 0 : index
    %43 = vector.load %arg7[%c0_17, %c0_18] : memref<128x128xbf16, #tpu.memory_space<vmem>>, vector<128x128xbf16>
    %cst_19 = arith.constant dense<0.000000e+00> : vector<64x128xf32>
    %44 = tpu.matmul %42, %43, %cst_19 {dimension_numbers = #tpu.dot_dimension_numbers<[1], [0], [0], [1], [0, 0, 1, 1], [], []>} : vector<64x128xbf16>, vector<128x128xbf16>, vector<64x128xf32> -> vector<64x128xf32>
    %45 = arith.addf %7, %44 : vector<64x128xf32>
    %46 = arith.truncf %45 : vector<64x128xf32> to vector<64x128xbf16>
    %c0_20 = arith.constant 0 : index
    %c0_21 = arith.constant 0 : index
    %47 = vector.load %arg8[%c0_20, %c0_21] : memref<128x256xbf16, #tpu.memory_space<vmem>>, vector<128x256xbf16>
    %cst_22 = arith.constant dense<0.000000e+00> : vector<64x256xf32>
    %48 = tpu.matmul %46, %47, %cst_22 {dimension_numbers = #tpu.dot_dimension_numbers<[1], [0], [0], [1], [0, 0, 1, 1], [], []>} : vector<64x128xbf16>, vector<128x256xbf16>, vector<64x256xf32> -> vector<64x256xf32>
    %49 = math.tanh %48 : vector<64x256xf32>
    %50 = arith.truncf %49 : vector<64x256xf32> to vector<64x256xbf16>
    %c0_23 = arith.constant 0 : index
    %c0_24 = arith.constant 0 : index
    %51 = vector.load %arg9[%c0_23, %c0_24] : memref<256x128xbf16, #tpu.memory_space<vmem>>, vector<256x128xbf16>
    %cst_25 = arith.constant dense<0.000000e+00> : vector<64x128xf32>
    %52 = tpu.matmul %50, %51, %cst_25 {dimension_numbers = #tpu.dot_dimension_numbers<[1], [0], [0], [1], [0, 0, 1, 1], [], []>} : vector<64x256xbf16>, vector<256x128xbf16>, vector<64x128xf32> -> vector<64x128xf32>
    %53 = arith.addf %45, %52 : vector<64x128xf32>
    %54 = tpu.iota {dimensions = array<i32: 0>} : vector<6x64xi32>
    %c0_26 = arith.constant 0 : index
    %c0_27 = arith.constant 0 : index
    %55 = vector.load %arg2[%c0_26, %c0_27] : memref<1x64xi32, #tpu.memory_space<vmem>>, vector<1x64xi32>
    %56 = vector.broadcast %55 : vector<1x64xi32> to vector<6x64xi32>
    %57 = arith.cmpi eq, %54, %56 : vector<6x64xi32>
    %c0_28 = arith.constant 0 : index
    %c0_29 = arith.constant 0 : index
    %58 = vector.load %arg4[%c0_28, %c0_29] : memref<1x64xf32, #tpu.memory_space<vmem>>, vector<1x64xf32>
    %cst_30 = arith.constant 0.000000e+00 : f32
    %59 = vector.shape_cast %58 : vector<1x64xf32> to vector<1x64xf32>
    %60 = vector.broadcast %59 : vector<1x64xf32> to vector<6x64xf32>
    %61 = vector.broadcast %cst_30 : f32 to vector<6x64xf32>
    %62 = arith.select %57, %60, %61 : vector<6x64xi1>, vector<6x64xf32>
    %cst_31 = arith.constant dense<0.000000e+00> : vector<6x128xf32>
    %63 = tpu.matmul %62, %53, %cst_31 {dimension_numbers = #tpu.dot_dimension_numbers<[1], [0], [0], [1], [0, 0, 1, 1], [], []>} : vector<6x64xf32>, vector<64x128xf32>, vector<6x128xf32> -> vector<6x128xf32>
    %64 = vector.extract_strided_slice %63 {offsets = [0, 0], sizes = [2, 128], strides = [1, 1]} : vector<6x128xf32> to vector<2x128xf32>
    %65 = vector.extract_strided_slice %63 {offsets = [2, 0], sizes = [4, 128], strides = [1, 1]} : vector<6x128xf32> to vector<4x128xf32>
    %c0_32 = arith.constant 0 : index
    %c0_33 = arith.constant 0 : index
    %66 = vector.load %arg12[%c0_32, %c0_33] : memref<2x128xf32, #tpu.memory_space<vmem>>, vector<2x128xf32>
    tpu.vector_store %arg12[%c0_32, %c0_33], %64 {strides = array<i32>} : memref<2x128xf32, #tpu.memory_space<vmem>>, vector<2x128xf32>,
    %c0_34 = arith.constant 0 : index
    %c0_35 = arith.constant 0 : index
    %67 = vector.load %arg13[%c0_34, %c0_35] : memref<4x128xf32, #tpu.memory_space<vmem>>, vector<4x128xf32>
    tpu.vector_store %arg13[%c0_34, %c0_35], %65 {strides = array<i32>} : memref<4x128xf32, #tpu.memory_space<vmem>>, vector<4x128xf32>,
    %68 = arith.mulf %64, %64 : vector<2x128xf32>
    %cst_36 = arith.constant dense<0.000000e+00> : vector<2xf32>
    %69 = vector.multi_reduction <add>, %68, %cst_36 [1] : vector<2x128xf32> to vector<2xf32>
    %70 = vector.shape_cast %69 : vector<2xf32> to vector<2x1xf32>
    %cst_37 = arith.constant 1.000000e-24 : f32
    %71 = vector.broadcast %cst_37 : f32 to vector<2x1xf32>
    %72 = arith.maximumf %70, %71 : vector<2x1xf32>
    %73 = math.rsqrt %72 : vector<2x1xf32>
    %74 = vector.broadcast %73 : vector<2x1xf32> to vector<2x128xf32>
    %75 = arith.mulf %64, %74 : vector<2x128xf32>
    %76 = arith.mulf %65, %65 : vector<4x128xf32>
    %cst_38 = arith.constant dense<0.000000e+00> : vector<4xf32>
    %77 = vector.multi_reduction <add>, %76, %cst_38 [1] : vector<4x128xf32> to vector<4xf32>
    %78 = vector.shape_cast %77 : vector<4xf32> to vector<4x1xf32>
    %cst_39 = arith.constant 1.000000e-24 : f32
    %79 = vector.broadcast %cst_39 : f32 to vector<4x1xf32>
    %80 = arith.maximumf %78, %79 : vector<4x1xf32>
    %81 = math.rsqrt %80 : vector<4x1xf32>
    %82 = vector.broadcast %81 : vector<4x1xf32> to vector<4x128xf32>
    %83 = arith.mulf %65, %82 : vector<4x128xf32>
    %cst_40 = arith.constant dense<0.000000e+00> : vector<2x4xf32>
    %84 = tpu.matmul %75, %83, %cst_40 {dimension_numbers = #tpu.dot_dimension_numbers<[1], [1], [0], [0], [0, 0, 1, 0], [], []>} : vector<2x128xf32>, vector<4x128xf32>, vector<2x4xf32> -> vector<2x4xf32>
    %c0_41 = arith.constant 0 : index
    %c0_42 = arith.constant 0 : index
    %85 = vector.load %arg11[%c0_41, %c0_42] : memref<2x4xf32, #tpu.memory_space<vmem>>, vector<2x4xf32>
    tpu.vector_store %arg11[%c0_41, %c0_42], %84 {strides = array<i32>} : memref<2x4xf32, #tpu.memory_space<vmem>>, vector<2x4xf32>,
    %cst_43 = arith.constant dense<0xFF800000> : vector<2xf32>
    %86 = vector.multi_reduction <maximumf>, %84, %cst_43 [1] : vector<2x4xf32> to vector<2xf32>
    %87 = vector.shape_cast %86 : vector<2xf32> to vector<2x1xf32>
    %88 = vector.broadcast %87 : vector<2x1xf32> to vector<2x4xf32>
    %89 = arith.subf %84, %88 : vector<2x4xf32>
    %90 = math.exp %89 : vector<2x4xf32>
    %cst_44 = arith.constant dense<0.000000e+00> : vector<2xf32>
    %91 = vector.multi_reduction <add>, %90, %cst_44 [1] : vector<2x4xf32> to vector<2xf32>
    %92 = vector.shape_cast %91 : vector<2xf32> to vector<2x1xf32>
    %93 = math.log %92 : vector<2x1xf32>
    %94 = arith.addf %87, %93 : vector<2x1xf32>
    %95 = tpu.iota {dimensions = array<i32: 0>} : vector<2x4xi32>
    %96 = tpu.iota {dimensions = array<i32: 1>} : vector<2x4xi32>
    %c2_i32 = arith.constant 2 : i32
    %97 = vector.broadcast %c2_i32 : i32 to vector<2x4xi32>
    %98 = arith.muli %95, %97 : vector<2x4xi32>
    %99 = arith.cmpi eq, %96, %98 : vector<2x4xi32>
    %cst_45 = arith.constant 0.000000e+00 : f32
    %100 = vector.broadcast %cst_45 : f32 to vector<2x4xf32>
    %101 = arith.select %99, %84, %100 : vector<2x4xi1>, vector<2x4xf32>
    %cst_46 = arith.constant dense<0.000000e+00> : vector<2xf32>
    %102 = vector.multi_reduction <add>, %101, %cst_46 [1] : vector<2x4xf32> to vector<2xf32>
    %103 = vector.shape_cast %102 : vector<2xf32> to vector<2x1xf32>
    %104 = arith.subf %94, %103 : vector<2x1xf32>
    %105 = vector.shape_cast %104 : vector<2x1xf32> to vector<1x2x1xf32>
    %cst_47 = arith.constant dense<0.000000e+00> : vector<1xf32>
    %106 = vector.multi_reduction <add>, %105, %cst_47 [1, 2] : vector<1x2x1xf32> to vector<1xf32>
    %107 = vector.shape_cast %106 : vector<1xf32> to vector<1x1x1xf32>
    %108 = vector.extract %107[0, 0, 0] : f32 from vector<1x1x1xf32>
    %cst_48 = arith.constant 5.000000e-01 : f32
    %109 = arith.mulf %108, %cst_48 : f32
    %c0_49 = arith.constant 0 : index
    %c0_50 = arith.constant 0 : index
    %110 = memref.load %arg10[%c0_49, %c0_50] : memref<1x1xf32, #tpu.memory_space<smem>>
    memref.store %109, %arg10[%c0_49, %c0_50] : memref<1x1xf32, #tpu.memory_space<smem>>
    return
  }
}

</mosaic_0001>

<llo_original>
// kernel: forward.1
$region0: #{forward.1}
  #allocation0 [shape = 'u32[]', space=smem, size = 0x4, offset = 0x4, fixed_abs, tag = 'smem constant byte address 0x4 - core index']
  #allocation1 [shape = 'u32[144,128]{1,0:T(1,128)}', space=vmem, size = 0x12000, scoped, tag = 'internal scratch']
  %s0 = inlined_call_operand.vmem [shape: s32[64,1], index: 0, kind: input, shape index: {}]
  %s1 = inlined_call_operand.vmem [shape: s32[64,1], index: 1, kind: input, shape index: {}]
  %s2 = inlined_call_operand.vmem [shape: s32[1,64], index: 2, kind: input, shape index: {}]
  %s3 = inlined_call_operand.vmem [shape: s32[1,64], index: 3, kind: input, shape index: {}]
  %s4 = inlined_call_operand.vmem [shape: f32[1,64], index: 4, kind: input, shape index: {}]
  %s5 = inlined_call_operand.hbm [shape: f32[128,128], index: 5, kind: input, shape index: {}]
  %s6 = inlined_call_operand.vmem [shape: bf16[128,384], index: 6, kind: input, shape index: {}]
  %s7 = inlined_call_operand.vmem [shape: bf16[128,128], index: 7, kind: input, shape index: {}]
  %s8 = inlined_call_operand.hbm [shape: bf16[128,256], index: 8, kind: input, shape index: {}]
  %s9 = inlined_call_operand.hbm [shape: bf16[256,128], index: 9, kind: input, shape index: {}]
  %s10 = inlined_call_operand.hbm [shape: f32[1,1], index: 10, kind: output, shape index: {0}]
  %s11 = inlined_call_operand.hbm [shape: f32[2,4], index: 11, kind: output, shape index: {1}]
  %s12 = inlined_call_operand.hbm [shape: f32[2,128], index: 12, kind: output, shape index: {2}]
  %s13 = inlined_call_operand.hbm [shape: f32[4,128], index: 13, kind: output, shape index: {3}]
  %14 = xla_tuple %s10, %s11, %s12, %s13
  %s15 = sld [smem:[#allocation0]]
  $region86: #{forward.1} parent=0
    _
  %s17 = ssub.s32 1, %s15
  %s18 = scalar_select 0, %s17, %s15
  $region1: #{forward.1} parent=0
    #allocation2 [shape = 'u8[65536]{0}', space=vmem, size = 0x10000, scoped, tag = 'input window, operand 5, single buffered']
    #allocation3 [shape = 's32[1]{0}', space=sflag, size = 0x4, scoped, tag = 'scoped memory for forward.1']
    #allocation4 [shape = 's32[1]{0}', space=sflag, size = 0x4, scoped, tag = 'scoped memory for forward.1']
    #allocation5 [shape = 's32[1]{0}', space=sflag, size = 0x4, scoped, tag = 'scoped memory for forward.1']
    #allocation6 [shape = 'u8[65536]{0}', space=vmem, size = 0x10000, scoped, tag = 'input window, operand 8, single buffered']
    #allocation7 [shape = 's32[1]{0}', space=sflag, size = 0x4, scoped, tag = 'scoped memory for forward.1']
    #allocation8 [shape = 'u8[65536]{0}', space=vmem, size = 0x10000, scoped, tag = 'input window, operand 9, single buffered']
    #allocation9 [shape = 'u8[512]{0}', space=smem, size = 0x200, scoped, tag = 'output window, operand 0, single buffered']
    #allocation10 [shape = 'u8[1024]{0}', space=vmem, size = 0x400, scoped, tag = 'output window, operand 1, single buffered']
    #allocation11 [shape = 'u8[1024]{0}', space=vmem, size = 0x400, scoped, tag = 'output window, operand 2, single buffered']
    #allocation12 [shape = 's32[1]{0}', space=sflag, size = 0x4, scoped, tag = 'scoped memory for forward.1']
    #allocation13 [shape = 'u8[2048]{0}', space=vmem, size = 0x800, scoped, tag = 'output window, operand 3, single buffered']
    %19 = vsyncpa [#allocation3], 0
    %20 = vsyncpa [#allocation7], 0
    %21 = vsyncpa [#allocation5], 0
    %22 = vsyncpa [#allocation4], 0
    %23 = vsyncpa [#allocation12], 0
    // Predicated region
    $region2: #{forward.1} parent=1 // pred_check
      _
    $region3: #{forward.1} parent=1 // pred_check_branch
      %25 = sbr.rel (0) target = $region5
    $region4: #{forward.1} parent=1 // pred_region
      _
    $region5: #{forward.1} parent=1 // pred_fallthru
      _
    // Predicated region
    $region6: #{forward.1} parent=1 // pred_check
      _
    $region7: #{forward.1} parent=1 // pred_check_branch
      %27 = sbr.rel (0) target = $region9
    $region8: #{forward.1} parent=1 // pred_region
      _
    $region9: #{forward.1} parent=1 // pred_fallthru
      _
    // Predicated region
    $region10: #{forward.1} parent=1 // pred_check
      _
    $region11: #{forward.1} parent=1 // pred_check_branch
      %29 = sbr.rel (0) target = $region13
    $region12: #{forward.1} parent=1 // pred_region
      _
    $region13: #{forward.1} parent=1 // pred_fallthru
      _
    // Predicated region
    $region14: #{forward.1} parent=1 // pred_check
      _
    $region15: #{forward.1} parent=1 // pred_check_branch
      %31 = sbr.rel (0) target = $region17
    $region16: #{forward.1} parent=1 // pred_region
      _
    $region17: #{forward.1} parent=1 // pred_fallthru
      _
    // Predicated region
    $region18: #{forward.1} parent=1 // pred_check
      _
    $region19: #{forward.1} parent=1 // pred_check_branch
      %33 = sbr.rel (0) target = $region21
    $region20: #{forward.1} parent=1 // pred_region
      _
    $region21: #{forward.1} parent=1 // pred_fallthru
      _
    // Predicated region
    $region22: #{forward.1} parent=1 // pred_check
      _
    $region23: #{forward.1} parent=1 // pred_check_branch
      %35 = sbr.rel (0) target = $region25
    $region24: #{forward.1} parent=1 // pred_region
      %s37 = ssub.s32 2048, 2048
      %38 = vsyncadd [#allocation3], %s37
      %s39 = sshll.u32 [#allocation2], 4
      %s40 = int_to_ptr.vmem [resolvable:$true] %s39
      %45 = dma.hbm_to_vmem [thread:$0]  %s5, 2048, %s40, [#allocation3], 128, 128, 8
    $region25: #{forward.1} parent=1 // pred_fallthru
      _
    // Predicated region
    $region26: #{forward.1} parent=1 // pred_check
      _
    $region27: #{forward.1} parent=1 // pred_check_branch
      %47 = sbr.rel (0) target = $region29
    $region28: #{forward.1} parent=1 // pred_region
      _
    $region29: #{forward.1} parent=1 // pred_fallthru
      _
    // Predicated region
    $region30: #{forward.1} parent=1 // pred_check
      _
    $region31: #{forward.1} parent=1 // pred_check_branch
      %49 = sbr.rel (0) target = $region33
    $region32: #{forward.1} parent=1 // pred_region
      _
    $region33: #{forward.1} parent=1 // pred_fallthru
      _
    // Predicated region
    $region34: #{forward.1} parent=1 // pred_check
      _
    $region35: #{forward.1} parent=1 // pred_check_branch
      %51 = sbr.rel (0) target = $region37
    $region36: #{forward.1} parent=1 // pred_region
      %s53 = ssub.s32 2048, 2048
      %54 = vsyncadd [#allocation7], %s53
      %s55 = sshll.u32 [#allocation6], 4
      %s56 = int_to_ptr.vmem [resolvable:$true] %s55
      %61 = dma.hbm_to_vmem [thread:$0]  %s8, 2048, %s56, [#allocation7], 128, 128, 8
    $region37: #{forward.1} parent=1 // pred_fallthru
      _
    // Predicated region
    $region38: #{forward.1} parent=1 // pred_check
      _
    $region39: #{forward.1} parent=1 // pred_check_branch
      %63 = sbr.rel (0) target = $region41
    $region40: #{forward.1} parent=1 // pred_region
      %s65 = ssub.s32 2048, 2048
      %66 = vsyncadd [#allocation7], %s65
      %s67 = sshll.u32 [#allocation8], 4
      %s68 = int_to_ptr.vmem [resolvable:$true] %s67
      %73 = dma.hbm_to_vmem [thread:$0]  %s9, 2048, %s68, [#allocation7], 64, 64, 4
    $region41: #{forward.1} parent=1 // pred_fallthru
      _
    // Predicated region
    $region42: #{forward.1} parent=1 // pred_check
      _
    $region43: #{forward.1} parent=1 // pred_check_branch
      %75 = sbr.rel (0) target = $region45
    $region44: #{forward.1} parent=1 // pred_region
      %76 = dma.done [#allocation3], 2048
    $region45: #{forward.1} parent=1 // pred_fallthru
      _
    // Predicated region
    $region46: #{forward.1} parent=1 // pred_check
      _
    $region47: #{forward.1} parent=1 // pred_check_branch
      %78 = sbr.rel (0) target = $region49
    $region48: #{forward.1} parent=1 // pred_region
      %79 = dma.done [#allocation7], 2048
    $region49: #{forward.1} parent=1 // pred_fallthru
      _
    // Predicated region
    $region50: #{forward.1} parent=1 // pred_check
      _
    $region51: #{forward.1} parent=1 // pred_check_branch
      %81 = sbr.rel (0) target = $region53
    $region52: #{forward.1} parent=1 // pred_region
      %82 = dma.done [#allocation7], 2048
    $region53: #{forward.1} parent=1 // pred_fallthru
      _
    %v84 = vld [vmem:[%s0] sm:$0xff]
    %v85 = vld [vmem:[%s0 + $0x8] sm:$0xff]
    %v86 = vld [vmem:[%s0 + $0x10] sm:$0xff]
    %v87 = vld [vmem:[%s0 + $0x18] sm:$0xff]
    %v88 = vld [vmem:[%s0 + $0x20] sm:$0xff]
    %v89 = vld [vmem:[%s0 + $0x28] sm:$0xff]
    %v90 = vld [vmem:[%s0 + $0x30] sm:$0xff]
    %v91 = vld [vmem:[%s0 + $0x38] sm:$0xff]
    %v92 = vlaneseq
    %v93 = vand.u32 %v92, 127
    %94 = vset.pattern.permute.xlu0 0
    %95 = vperm.xlu0 %94, %v84
    %v96 = vpop.permute.xlu0 %95
    %97 = vset.pattern.permute.xlu0 0
    %98 = vperm.xlu0 %97, %v85
    %v99 = vpop.permute.xlu0 %98
    %100 = vset.pattern.permute.xlu0 0
    %101 = vperm.xlu0 %100, %v86
    %v102 = vpop.permute.xlu0 %101
    %103 = vset.pattern.permute.xlu0 0
    %104 = vperm.xlu0 %103, %v87
    %v105 = vpop.permute.xlu0 %104
    %106 = vset.pattern.permute.xlu0 0
    %107 = vperm.xlu0 %106, %v88
    %v108 = vpop.permute.xlu0 %107
    %109 = vset.pattern.permute.xlu0 0
    %110 = vperm.xlu0 %109, %v89
    %v111 = vpop.permute.xlu0 %110
    %112 = vset.pattern.permute.xlu0 0
    %113 = vperm.xlu0 %112, %v90
    %v114 = vpop.permute.xlu0 %113
    %115 = vset.pattern.permute.xlu0 0
    %116 = vperm.xlu0 %115, %v91
    %v117 = vpop.permute.xlu0 %116
    %vm118 = vcmp.eq.s32.totalorder %v96, %v93
    %vm119 = vcmp.eq.s32.totalorder %v99, %v93
    %vm120 = vcmp.eq.s32.totalorder %v102, %v93
    %vm121 = vcmp.eq.s32.totalorder %v105, %v93
    %vm122 = vcmp.eq.s32.totalorder %v108, %v93
    %vm123 = vcmp.eq.s32.totalorder %v111, %v93
    %vm124 = vcmp.eq.s32.totalorder %v114, %v93
    %vm125 = vcmp.eq.s32.totalorder %v117, %v93
    %v126 = vsel %vm118, 1, 0
    %v127 = vsel %vm119, 1, 0
    %v128 = vsel %vm120, 1, 0
    %v129 = vsel %vm121, 1, 0
    %v130 = vsel %vm122, 1, 0
    %v131 = vsel %vm123, 1, 0
    %v132 = vsel %vm124, 1, 0
    %v133 = vsel %vm125, 1, 0
    %v134 = vcvt.s32.f32 %v126
    %v135 = vcvt.s32.f32 %v127
    %v136 = vcvt.s32.f32 %v128
    %v137 = vcvt.s32.f32 %v129
    %v138 = vcvt.s32.f32 %v130
    %v139 = vcvt.s32.f32 %v131
    %v140 = vcvt.s32.f32 %v132
    %v141 = vcvt.s32.f32 %v133
    %v142 = vld [vmem:[#allocation2] sm:$0xff]
    %v143 = vld [vmem:[#allocation2 + $0x8] sm:$0xff]
    %v144 = vld [vmem:[#allocation2 + $0x10] sm:$0xff]
    %v145 = vld [vmem:[#allocation2 + $0x18] sm:$0xff]
    %v146 = vld [vmem:[#allocation2 + $0x20] sm:$0xff]
    %v147 = vld [vmem:[#allocation2 + $0x28] sm:$0xff]
    %v148 = vld [vmem:[#allocation2 + $0x30] sm:$0xff]
    %v149 = vld [vmem:[#allocation2 + $0x38] sm:$0xff]
    %v150 = vld [vmem:[#allocation2 + $0x40] sm:$0xff]
    %v151 = vld [vmem:[#allocation2 + $0x48] sm:$0xff]
    %v152 = vld [vmem:[#allocation2 + $0x50] sm:$0xff]
    %v153 = vld [vmem:[#allocation2 + $0x58] sm:$0xff]
    %v154 = vld [vmem:[#allocation2 + $0x60] sm:$0xff]
    %v155 = vld [vmem:[#allocation2 + $0x68] sm:$0xff]
    %v156 = vld [vmem:[#allocation2 + $0x70] sm:$0xff]
    %v157 = vld [vmem:[#allocation2 + $0x78] sm:$0xff]
    %158 = vmatprep.subr.mxu0 0.0
    %159 = vmatpush1.msra.mxu0 %v142
    %160 = vmatprep.subr.mxu0 0.0
    %161 = vmatpush1.msra.mxu0 %v143
    %162 = vmatprep.subr.mxu0 0.0
    %163 = vmatpush1.msra.mxu0 %v144
    %164 = vmatprep.subr.mxu0 0.0
    %165 = vmatpush1.msra.mxu0 %v145
    %166 = vmatprep.subr.mxu0 0.0
    %167 = vmatpush1.msra.mxu0 %v146
    %168 = vmatprep.subr.mxu0 0.0
    %169 = vmatpush1.msra.mxu0 %v147
    %170 = vmatprep.subr.mxu0 0.0
    %171 = vmatpush1.msra.mxu0 %v148
    %172 = vmatprep.subr.mxu0 0.0
    %173 = vmatpush1.msra.mxu0 %v149
    %174 = vmatprep.subr.mxu0 0.0
    %175 = vmatpush1.msra.mxu0 %v150
    %176 = vmatprep.subr.mxu0 0.0
    %177 = vmatpush1.msra.mxu0 %v151
    %178 = vmatprep.subr.mxu0 0.0
    %179 = vmatpush1.msra.mxu0 %v152
    %180 = vmatprep.subr.mxu0 0.0
    %181 = vmatpush1.msra.mxu0 %v153
    %182 = vmatprep.subr.mxu0 0.0
    %183 = vmatpush1.msra.mxu0 %v154
    %184 = vmatprep.subr.mxu0 0.0
    %185 = vmatpush1.msra.mxu0 %v155
    %186 = vmatprep.subr.mxu0 0.0
    %187 = vmatpush1.msra.mxu0 %v156
    %188 = vmatprep.subr.mxu0 0.0
    %189 = vmatpush1.msra.mxu0 %v157
    %190 = vmatprep.subr.mxu0 0.0
    %191 = vmatpush1.msra.mxu0 0.0
    %192 = vmatprep.subr.mxu0 0.0
    %193 = vmatpush1.msra.mxu0 0.0
    %194 = vmatprep.subr.mxu0 0.0
    %195 = vmatpush1.msra.mxu0 0.0
    %196 = vmatprep.subr.mxu0 0.0
    %197 = vmatpush1.msra.mxu0 0.0
    %198 = vmatprep.subr.mxu0 0.0
    %199 = vmatpush1.msra.mxu0 0.0
    %200 = vmatprep.subr.mxu0 0.0
    %201 = vmatpush1.msra.mxu0 0.0
    %202 = vmatprep.subr.mxu0 0.0
    %203 = vmatpush1.msra.mxu0 0.0
    %204 = vmatprep.subr.mxu0 0.0
    %205 = vmatpush1.msra.mxu0 0.0
    %206 = vmatprep.subr.mxu0 0.0
    %207 = vmatpush1.msra.mxu0 0.0
    %208 = vmatprep.subr.mxu0 0.0
    %209 = vmatpush1.msra.mxu0 0.0
    %210 = vmatprep.subr.mxu0 0.0
    %211 = vmatpush1.msra.mxu0 0.0
    %212 = vmatprep.subr.mxu0 0.0
    %213 = vmatpush1.msra.mxu0 0.0
    %214 = vmatprep.subr.mxu0 0.0
    %215 = vmatpush1.msra.mxu0 0.0
    %216 = vmatprep.subr.mxu0 0.0
    %217 = vmatpush1.msra.mxu0 0.0
    %218 = vmatprep.subr.mxu0 0.0
    %219 = vmatpush1.msra.mxu0 0.0
    %220 = vmatprep.subr.mxu0 0.0
    %221 = vmatpush1.msra.mxu0 0.0
    %222 = vmatprep.mubr.f32.mxu0 0.0
    %223 = vmatmul.mubr.f32.gmra.mrb[0].mxu0 %v134
    %v224 = vpop.f32.mrb[0].mxu0
    %v225 = vadd.f32 0.0, %v224
    %v226 = vpop.f32.mrb[0].mxu0
    %227 = vmatprep.mubr.f32.mxu0 0.0
    %228 = vmatmul.mubr.f32.gmra.mrb[0].mxu0 %v135
    %v229 = vpop.f32.mrb[0].mxu0
    %v230 = vadd.f32 0.0, %v229
    %v231 = vpop.f32.mrb[0].mxu0
    %232 = vmatprep.mubr.f32.mxu0 0.0
    %233 = vmatmul.mubr.f32.gmra.mrb[0].mxu0 %v136
    %v234 = vpop.f32.mrb[0].mxu0
    %v235 = vadd.f32 0.0, %v234
    %v236 = vpop.f32.mrb[0].mxu0
    %237 = vmatprep.mubr.f32.mxu0 0.0
    %238 = vmatmul.mubr.f32.gmra.mrb[0].mxu0 %v137
    %v239 = vpop.f32.mrb[0].mxu0
    %v240 = vadd.f32 0.0, %v239
    %v241 = vpop.f32.mrb[0].mxu0
    %242 = vmatprep.mubr.f32.mxu0 0.0
    %243 = vmatmul.mubr.f32.gmra.mrb[0].mxu0 %v138
    %v244 = vpop.f32.mrb[0].mxu0
    %v245 = vadd.f32 0.0, %v244
    %v246 = vpop.f32.mrb[0].mxu0
    %247 = vmatprep.mubr.f32.mxu0 0.0
    %248 = vmatmul.mubr.f32.gmra.mrb[0].mxu0 %v139
    %v249 = vpop.f32.mrb[0].mxu0
    %v250 = vadd.f32 0.0, %v249
    %v251 = vpop.f32.mrb[0].mxu0
    %252 = vmatprep.mubr.f32.mxu0 0.0
    %253 = vmatmul.mubr.f32.gmra.mrb[0].mxu0 %v140
    %v254 = vpop.f32.mrb[0].mxu0
    %v255 = vadd.f32 0.0, %v254
    %v256 = vpop.f32.mrb[0].mxu0
    %257 = vmatprep.mubr.f32.mxu0 0.0
    %258 = vmatmul.mubr.f32.gmra.mrb[0].mxu0 %v141
    %v259 = vpop.f32.mrb[0].mxu0
    %v260 = vadd.f32 0.0, %v259
    %v261 = vpop.f32.mrb[0].mxu0
    %262 = vdwg.mxu0
    %v263 = vpack.c.bf16 %v230, %v225
    %v264 = vpack.c.bf16 %v240, %v235
    %v265 = vpack.c.bf16 %v250, %v245
    %v266 = vpack.c.bf16 %v260, %v255
    %v267 = vld [vmem:[%s6] sm:$0xff]
    %v268 = vld [vmem:[%s6 + $0x8] sm:$0xf]
    %v269 = vld [vmem:[%s6 + $0xc] sm:$0xff]
    %v270 = vld [vmem:[%s6 + $0x14] sm:$0xf]
    %v271 = vld [vmem:[%s6 + $0x18] sm:$0xff]
    %v272 = vld [vmem:[%s6 + $0x20] sm:$0xf]
    %v273 = vld [vmem:[%s6 + $0x24] sm:$0xff]
    %v274 = vld [vmem:[%s6 + $0x2c] sm:$0xf]
    %v275 = vld [vmem:[%s6 + $0x30] sm:$0xff]
    %v276 = vld [vmem:[%s6 + $0x38] sm:$0xf]
    %v277 = vld [vmem:[%s6 + $0x3c] sm:$0xff]
    %v278 = vld [vmem:[%s6 + $0x44] sm:$0xf]
    %v279 = vld [vmem:[%s6 + $0x48] sm:$0xff]
    %v280 = vld [vmem:[%s6 + $0x50] sm:$0xf]
    %v281 = vld [vmem:[%s6 + $0x54] sm:$0xff]
    %v282 = vld [vmem:[%s6 + $0x5c] sm:$0xf]
    %v283 = vld [vmem:[%s6 + $0x60] sm:$0xff]
    %v284 = vld [vmem:[%s6 + $0x68] sm:$0xf]
    %v285 = vld [vmem:[%s6 + $0x6c] sm:$0xff]
    %v286 = vld [vmem:[%s6 + $0x74] sm:$0xf]
    %v287 = vld [vmem:[%s6 + $0x78] sm:$0xff]
    %v288 = vld [vmem:[%s6 + $0x80] sm:$0xf]
    %v289 = vld [vmem:[%s6 + $0x84] sm:$0xff]
    %v290 = vld [vmem:[%s6 + $0x8c] sm:$0xf]
    %v291 = vld [vmem:[%s6 + $0x90] sm:$0xff]
    %v292 = vld [vmem:[%s6 + $0x98] sm:$0xf]
    %v293 = vld [vmem:[%s6 + $0x9c] sm:$0xff]
    %v294 = vld [vmem:[%s6 + $0xa4] sm:$0xf]
    %v295 = vld [vmem:[%s6 + $0xa8] sm:$0xff]
    %v296 = vld [vmem:[%s6 + $0xb0] sm:$0xf]
    %v297 = vld [vmem:[%s6 + $0xb4] sm:$0xff]
    %v298 = vld [vmem:[%s6 + $0xbc] sm:$0xf]
    %v331 = vunpack.c.l.b16 %v267
    %v332 = vunpack.c.h.b16 %v267
    %v333 = vunpack.c.l.b16 %v268
    %v334 = vunpack.c.l.b16 %v269
    %v335 = vunpack.c.h.b16 %v269
    %v336 = vunpack.c.l.b16 %v270
    %v337 = vunpack.c.l.b16 %v271
    %v338 = vunpack.c.h.b16 %v271
    %v339 = vunpack.c.l.b16 %v272
    %v340 = vunpack.c.l.b16 %v273
    %v341 = vunpack.c.h.b16 %v273
    %v342 = vunpack.c.l.b16 %v274
    %v343 = vunpack.c.l.b16 %v275
    %v344 = vunpack.c.h.b16 %v275
    %v345 = vunpack.c.l.b16 %v276
    %v346 = vunpack.c.l.b16 %v277
    %v347 = vunpack.c.h.b16 %v277
    %v348 = vunpack.c.l.b16 %v278
    %v349 = vunpack.c.l.b16 %v279
    %v350 = vunpack.c.h.b16 %v279
    %v351 = vunpack.c.l.b16 %v280
    %v352 = vunpack.c.l.b16 %v281
    %v353 = vunpack.c.h.b16 %v281
    %v354 = vunpack.c.l.b16 %v282
    %v355 = vunpack.c.l.b16 %v283
    %v356 = vunpack.c.h.b16 %v283
    %v357 = vunpack.c.l.b16 %v284
    %v358 = vunpack.c.l.b16 %v285
    %v359 = vunpack.c.h.b16 %v285
    %v360 = vunpack.c.l.b16 %v286
    %v361 = vunpack.c.l.b16 %v287
    %v362 = vunpack.c.h.b16 %v287
    %v363 = vunpack.c.l.b16 %v288
    %v364 = vunpack.c.l.b16 %v289
    %v365 = vunpack.c.h.b16 %v289
    %v366 = vunpack.c.l.b16 %v290
    %v367 = vunpack.c.l.b16 %v291
    %v368 = vunpack.c.h.b16 %v291
    %v369 = vunpack.c.l.b16 %v292
    %v370 = vunpack.c.l.b16 %v293
    %v371 = vunpack.c.h.b16 %v293
    %v372 = vunpack.c.l.b16 %v294
    %v373 = vunpack.c.l.b16 %v295
    %v374 = vunpack.c.h.b16 %v295
    %v375 = vunpack.c.l.b16 %v296
    %v376 = vunpack.c.l.b16 %v297
    %v377 = vunpack.c.h.b16 %v297
    %v378 = vunpack.c.l.b16 %v298
    %v379 = vpack.c.b16 %v334, %v331
    %v380 = vpack.c.b16 %v335, %v332
    %v381 = vpack.c.b16 %v336, %v333
    %v382 = vpack.c.b16 %v340, %v337
    %v383 = vpack.c.b16 %v341, %v338
    %v384 = vpack.c.b16 %v342, %v339
    %v385 = vpack.c.b16 %v346, %v343
    %v386 = vpack.c.b16 %v347, %v344
    %v387 = vpack.c.b16 %v348, %v345
    %v388 = vpack.c.b16 %v352, %v349
    %v389 = vpack.c.b16 %v353, %v350
    %v390 = vpack.c.b16 %v354, %v351
    %v391 = vpack.c.b16 %v358, %v355
    %v392 = vpack.c.b16 %v359, %v356
    %v393 = vpack.c.b16 %v360, %v357
    %v394 = vpack.c.b16 %v364, %v361
    %v395 = vpack.c.b16 %v365, %v362
    %v396 = vpack.c.b16 %v366, %v363
    %v397 = vpack.c.b16 %v370, %v367
    %v398 = vpack.c.b16 %v371, %v368
    %v399 = vpack.c.b16 %v372, %v369
    %v400 = vpack.c.b16 %v376, %v373
    %v401 = vpack.c.b16 %v377, %v374
    %v402 = vpack.c.b16 %v378, %v375
    %427 = vmatprep.subr.bf16.mxu0 %v380
    %428 = vmatpush1.bf16.msra.mxu0 %v379
    %429 = vmatprep.subr.bf16.mxu0 %v383
    %430 = vmatpush1.bf16.msra.mxu0 %v382
    %431 = vmatprep.subr.bf16.mxu0 %v386
    %432 = vmatpush1.bf16.msra.mxu0 %v385
    %433 = vmatprep.subr.bf16.mxu0 %v389
    %434 = vmatpush1.bf16.msra.mxu0 %v388
    %435 = vmatprep.subr.bf16.mxu0 %v392
    %436 = vmatpush1.bf16.msra.mxu0 %v391
    %437 = vmatprep.subr.bf16.mxu0 %v395
    %438 = vmatpush1.bf16.msra.mxu0 %v394
    %439 = vmatprep.subr.bf16.mxu0 %v398
    %440 = vmatpush1.bf16.msra.mxu0 %v397
    %441 = vmatprep.subr.bf16.mxu0 %v401
    %442 = vmatpush1.bf16.msra.mxu0 %v400
    %443 = vmatprep.subr.bf16.mxu0 0
    %444 = vmatpush1.bf16.msra.mxu0 0
    %445 = vmatprep.subr.bf16.mxu0 0
    %446 = vmatpush1.bf16.msra.mxu0 0
    %447 = vmatprep.subr.bf16.mxu0 0
    %448 = vmatpush1.bf16.msra.mxu0 0
    %449 = vmatprep.subr.bf16.mxu0 0
    %450 = vmatpush1.bf16.msra.mxu0 0
    %451 = vmatprep.subr.bf16.mxu0 0
    %452 = vmatpush1.bf16.msra.mxu0 0
    %453 = vmatprep.subr.bf16.mxu0 0
    %454 = vmatpush1.bf16.msra.mxu0 0
    %455 = vmatprep.subr.bf16.mxu0 0
    %456 = vmatpush1.bf16.msra.mxu0 0
    %457 = vmatprep.subr.bf16.mxu0 0
    %458 = vmatpush1.bf16.msra.mxu0 0
    %459 = vmatprep.mubr.bf16.mxu0 0
    %460 = vmatmul.mubr.bf16.gmra.mrb[0].mxu0 %v263
    %v461 = vpop.f32.mrb[0].mxu0
    %v462 = vadd.f32 0.0, %v461
    %v463 = vpop.f32.mrb[0].mxu0
    %v464 = vadd.f32 0.0, %v463
    %v465 = vpop.f32.mrb[0].mxu0
    %v466 = vadd.f32 0.0, %v465
    %v467 = vpop.f32.mrb[0].mxu0
    %v468 = vadd.f32 0.0, %v467
    %469 = vmatprep.mubr.bf16.mxu0 0
    %470 = vmatmul.mubr.bf16.gmra.mrb[0].mxu0 %v264
    %v471 = vpop.f32.mrb[0].mxu0
    %v472 = vadd.f32 0.0, %v471
    %v473 = vpop.f32.mrb[0].mxu0
    %v474 = vadd.f32 0.0, %v473
    %v475 = vpop.f32.mrb[0].mxu0
    %v476 = vadd.f32 0.0, %v475
    %v477 = vpop.f32.mrb[0].mxu0
    %v478 = vadd.f32 0.0, %v477
    %479 = vmatprep.mubr.bf16.mxu0 0
    %480 = vmatmul.mubr.bf16.gmra.mrb[0].mxu0 %v265
    %v481 = vpop.f32.mrb[0].mxu0
    %v482 = vadd.f32 0.0, %v481
    %v483 = vpop.f32.mrb[0].mxu0
    %v484 = vadd.f32 0.0, %v483
    %v485 = vpop.f32.mrb[0].mxu0
    %v486 = vadd.f32 0.0, %v485
    %v487 = vpop.f32.mrb[0].mxu0
    %v488 = vadd.f32 0.0, %v487
    %489 = vmatprep.mubr.bf16.mxu0 0
    %490 = vmatmul.mubr.bf16.gmra.mrb[0].mxu0 %v266
    %v491 = vpop.f32.mrb[0].mxu0
    %v492 = vadd.f32 0.0, %v491
    %v493 = vpop.f32.mrb[0].mxu0
    %v494 = vadd.f32 0.0, %v493
    %v495 = vpop.f32.mrb[0].mxu0
    %v496 = vadd.f32 0.0, %v495
    %v497 = vpop.f32.mrb[0].mxu0
    %v498 = vadd.f32 0.0, %v497
    %499 = vdwg.mxu0
    %500 = vmatprep.subr.bf16.mxu0 0
    %501 = vmatpush1.bf16.msra.mxu0 %v381
    %502 = vmatprep.subr.bf16.mxu0 0
    %503 = vmatpush1.bf16.msra.mxu0 %v384
    %504 = vmatprep.subr.bf16.mxu0 0
    %505 = vmatpush1.bf16.msra.mxu0 %v387
    %506 = vmatprep.subr.bf16.mxu0 0
    %507 = vmatpush1.bf16.msra.mxu0 %v390
    %508 = vmatprep.subr.bf16.mxu0 0
    %509 = vmatpush1.bf16.msra.mxu0 %v393
    %510 = vmatprep.subr.bf16.mxu0 0
    %511 = vmatpush1.bf16.msra.mxu0 %v396
    %512 = vmatprep.subr.bf16.mxu0 0
    %513 = vmatpush1.bf16.msra.mxu0 %v399
    %514 = vmatprep.subr.bf16.mxu0 0
    %515 = vmatpush1.bf16.msra.mxu0 %v402
    %516 = vmatprep.subr.bf16.mxu0 0
    %517 = vmatpush1.bf16.msra.mxu0 0
    %518 = vmatprep.subr.bf16.mxu0 0
    %519 = vmatpush1.bf16.msra.mxu0 0
    %520 = vmatprep.subr.bf16.mxu0 0
    %521 = vmatpush1.bf16.msra.mxu0 0
    %522 = vmatprep.subr.bf16.mxu0 0
    %523 = vmatpush1.bf16.msra.mxu0 0
    %524 = vmatprep.subr.bf16.mxu0 0
    %525 = vmatpush1.bf16.msra.mxu0 0
    %526 = vmatprep.subr.bf16.mxu0 0
    %527 = vmatpush1.bf16.msra.mxu0 0
    %528 = vmatprep.subr.bf16.mxu0 0
    %529 = vmatpush1.bf16.msra.mxu0 0
    %530 = vmatprep.subr.bf16.mxu0 0
    %531 = vmatpush1.bf16.msra.mxu0 0
    %532 = vmatprep.mubr.bf16.mxu0 0
    %533 = vmatmul.mubr.bf16.gmra.mrb[0].mxu0 %v263
    %v534 = vpop.f32.mrb[0].mxu0
    %v535 = vadd.f32 0.0, %v534
    %v536 = vpop.f32.mrb[0].mxu0
    %v537 = vpop.f32.mrb[0].mxu0
    %v538 = vadd.f32 0.0, %v537
    %v539 = vpop.f32.mrb[0].mxu0
    %540 = vmatprep.mubr.bf16.mxu0 0
    %541 = vmatmul.mubr.bf16.gmra.mrb[0].mxu0 %v264
    %v542 = vpop.f32.mrb[0].mxu0
    %v543 = vadd.f32 0.0, %v542
    %v544 = vpop.f32.mrb[0].mxu0
    %v545 = vpop.f32.mrb[0].mxu0
    %v546 = vadd.f32 0.0, %v545
    %v547 = vpop.f32.mrb[0].mxu0
    %548 = vmatprep.mubr.bf16.mxu0 0
    %549 = vmatmul.mubr.bf16.gmra.mrb[0].mxu0 %v265
    %v550 = vpop.f32.mrb[0].mxu0
    %v551 = vadd.f32 0.0, %v550
    %v552 = vpop.f32.mrb[0].mxu0
    %v553 = vpop.f32.mrb[0].mxu0
    %v554 = vadd.f32 0.0, %v553
    %v555 = vpop.f32.mrb[0].mxu0
    %556 = vmatprep.mubr.bf16.mxu0 0
    %557 = vmatmul.mubr.bf16.gmra.mrb[0].mxu0 %v266
    %v558 = vpop.f32.mrb[0].mxu0
    %v559 = vadd.f32 0.0, %v558
    %v560 = vpop.f32.mrb[0].mxu0
    %v561 = vpop.f32.mrb[0].mxu0
    %v562 = vadd.f32 0.0, %v561
    %v563 = vpop.f32.mrb[0].mxu0
    %564 = vdwg.mxu0
    %v565 = vpack.c.bf16 %v466, %v462
    %v566 = vpack.c.bf16 %v476, %v472
    %v567 = vpack.c.bf16 %v486, %v482
    %v568 = vpack.c.bf16 %v496, %v492
    %v569 = vpack.c.bf16 %v468, %v464
    %v570 = vpack.c.bf16 %v478, %v474
    %v571 = vpack.c.bf16 %v488, %v484
    %v572 = vpack.c.bf16 %v498, %v494
    %573 = vmatprep.subr.bf16.mxu0 0
    %574 = vmatpush1.bf16.xpose.msra.mxu0 %v569
    %575 = vmatprep.subr.bf16.mxu0 0
    %576 = vmatpush1.bf16.xpose.msra.mxu0 %v570
    %577 = vmatprep.subr.bf16.mxu0 0
    %578 = vmatpush1.bf16.xpose.msra.mxu0 %v571
    %579 = vmatprep.subr.bf16.mxu0 0
    %580 = vmatpush1.bf16.xpose.msra.mxu0 %v572
    %581 = vmatprep.subr.bf16.mxu0 0
    %582 = vmatpush1.bf16.xpose.msra.mxu0 0
    %583 = vmatprep.subr.bf16.mxu0 0
    %584 = vmatpush1.bf16.xpose.msra.mxu0 0
    %585 = vmatprep.subr.bf16.mxu0 0
    %586 = vmatpush1.bf16.xpose.msra.mxu0 0
    %587 = vmatprep.subr.bf16.mxu0 0
    %588 = vmatpush1.bf16.xpose.msra.mxu0 0
    %589 = vmatprep.subr.bf16.mxu0 0
    %590 = vmatpush1.bf16.xpose.msra.mxu0 0
    %591 = vmatprep.subr.bf16.mxu0 0
    %592 = vmatpush1.bf16.xpose.msra.mxu0 0
    %593 = vmatprep.subr.bf16.mxu0 0
    %594 = vmatpush1.bf16.xpose.msra.mxu0 0
    %595 = vmatprep.subr.bf16.mxu0 0
    %596 = vmatpush1.bf16.xpose.msra.mxu0 0
    %597 = vmatprep.subr.bf16.mxu0 0
    %598 = vmatpush1.bf16.xpose.msra.mxu0 0
    %599 = vmatprep.subr.bf16.mxu0 0
    %600 = vmatpush1.bf16.xpose.msra.mxu0 0
    %601 = vmatprep.subr.bf16.mxu0 0
    %602 = vmatpush1.bf16.xpose.msra.mxu0 0
    %603 = vmatprep.subr.bf16.mxu0 0
    %604 = vmatpush1.bf16.xpose.msra.mxu0 0
    %605 = vmatprep.mubr.bf16.mxu0 0
    %606 = vmatmul.mubr.bf16.gmra.mrb[0].mxu0 %v565
    %v607 = vpop.f32.mrb[0].mxu0
    %v608 = vadd.f32 0.0, %v607
    %v609 = vpop.f32.mrb[0].mxu0
    %v610 = vpop.f32.mrb[0].mxu0
    %v611 = vadd.f32 0.0, %v610
    %v612 = vpop.f32.mrb[0].mxu0
    %613 = vmatprep.mubr.bf16.mxu0 0
    %614 = vmatmul.mubr.bf16.gmra.mrb[0].mxu0 %v566
    %v615 = vpop.f32.mrb[0].mxu0
    %v616 = vadd.f32 0.0, %v615
    %v617 = vpop.f32.mrb[0].mxu0
    %v618 = vpop.f32.mrb[0].mxu0
    %v619 = vadd.f32 0.0, %v618
    %v620 = vpop.f32.mrb[0].mxu0
    %621 = vmatprep.mubr.bf16.mxu0 0
    %622 = vmatmul.mubr.bf16.gmra.mrb[0].mxu0 %v567
    %v623 = vpop.f32.mrb[0].mxu0
    %v624 = vadd.f32 0.0, %v623
    %v625 = vpop.f32.mrb[0].mxu0
    %v626 = vpop.f32.mrb[0].mxu0
    %v627 = vadd.f32 0.0, %v626
    %v628 = vpop.f32.mrb[0].mxu0
    %629 = vmatprep.mubr.bf16.mxu0 0
    %630 = vmatmul.mubr.bf16.gmra.mrb[0].mxu0 %v568
    %v631 = vpop.f32.mrb[0].mxu0
    %v632 = vadd.f32 0.0, %v631
    %v633 = vpop.f32.mrb[0].mxu0
    %v634 = vpop.f32.mrb[0].mxu0
    %v635 = vadd.f32 0.0, %v634
    %v636 = vpop.f32.mrb[0].mxu0
    %637 = vdwg.mxu0
    %v638 = vld [vmem:[%s1] sm:$0xff]
    %v639 = vld [vmem:[%s1 + $0x8] sm:$0xff]
    %v640 = vld [vmem:[%s1 + $0x10] sm:$0xff]
    %v641 = vld [vmem:[%s1 + $0x18] sm:$0xff]
    %v642 = vld [vmem:[%s1 + $0x20] sm:$0xff]
    %v643 = vld [vmem:[%s1 + $0x28] sm:$0xff]
    %v644 = vld [vmem:[%s1 + $0x30] sm:$0xff]
    %v645 = vld [vmem:[%s1 + $0x38] sm:$0xff]
    %v646 = vld [vmem:[%s2] sm:$0x1]
    %647 = vset.pattern.permute.xlu0 0
    %648 = vperm.xlu0 %647, %v638
    %v649 = vpop.permute.xlu0 %648
    %650 = vset.pattern.permute.xlu0 0
    %651 = vperm.xlu0 %650, %v639
    %v652 = vpop.permute.xlu0 %651
    %653 = vset.pattern.permute.xlu0 0
    %654 = vperm.xlu0 %653, %v640
    %v655 = vpop.permute.xlu0 %654
    %656 = vset.pattern.permute.xlu0 0
    %657 = vperm.xlu0 %656, %v641
    %v658 = vpop.permute.xlu0 %657
    %659 = vset.pattern.permute.xlu0 0
    %660 = vperm.xlu0 %659, %v642
    %v661 = vpop.permute.xlu0 %660
    %662 = vset.pattern.permute.xlu0 0
    %663 = vperm.xlu0 %662, %v643
    %v664 = vpop.permute.xlu0 %663
    %665 = vset.pattern.permute.xlu0 0
    %666 = vperm.xlu0 %665, %v644
    %v667 = vpop.permute.xlu0 %666
    %668 = vset.pattern.permute.xlu0 0
    %669 = vperm.xlu0 %668, %v645
    %v670 = vpop.permute.xlu0 %669
    %v671 = vlaneseq
    %v672 = vshrl.u32 %v671, 7
    %v673 = vsub.s32 0, %v672
    %v674 = vrot.slane %v646, %v673
    %vm675 = vcmp.eq.s32.totalorder %v649, %v674
    %vm676 = vcmp.eq.s32.totalorder %v652, %v674
    %vm677 = vcmp.eq.s32.totalorder %v655, %v674
    %vm678 = vcmp.eq.s32.totalorder %v658, %v674
    %vm679 = vcmp.eq.s32.totalorder %v661, %v674
    %vm680 = vcmp.eq.s32.totalorder %v664, %v674
    %vm681 = vcmp.eq.s32.totalorder %v667, %v674
    %vm682 = vcmp.eq.s32.totalorder %v670, %v674
    %v683 = vld [vmem:[%s3] sm:$0x1]
    %vm684 = vcmp.gt.s32.totalorder %v683, 0
    %v685 = vsel %vm684, 1, 0
    %v686 = vlaneseq
    %v687 = vshrl.u32 %v686, 7
    %v688 = vsub.s32 0, %v687
    %v689 = vrot.slane %v685, %v688
    %vm690 = vcmp.eq.s32.totalorder %v689, 1
    %vm691 = vmand %vm675, %vm690
    %vm692 = vmand %vm676, %vm690
    %vm693 = vmand %vm677, %vm690
    %vm694 = vmand %vm678, %vm690
    %vm695 = vmand %vm679, %vm690
    %vm696 = vmand %vm680, %vm690
    %vm697 = vmand %vm681, %vm690
    %vm698 = vmand %vm682, %vm690
    %v699 = vsel %vm691, %v608, -1e+09
    %v700 = vsel %vm692, %v611, -1e+09
    %v701 = vsel %vm693, %v616, -1e+09
    %v702 = vsel %vm694, %v619, -1e+09
    %v703 = vsel %vm695, %v624, -1e+09
    %v704 = vsel %vm696, %v627, -1e+09
    %v705 = vsel %vm697, %v632, -1e+09
    %v706 = vsel %vm698, %v635, -1e+09
    %vm707 = vcmask 523264
    %v708 = vsel %vm707, %v699, -inf
    %709 = vmax.xlane.f32.xlu0 %v708
    %v710 = vpop.xlane.xlu0 %709
    %v711 = vsel %vm707, %v700, -inf
    %712 = vmax.xlane.f32.xlu0 %v711
    %v713 = vpop.xlane.xlu0 %712
    %v714 = vsel %vm707, %v701, -inf
    %715 = vmax.xlane.f32.xlu0 %v714
    %v716 = vpop.xlane.xlu0 %715
    %v717 = vsel %vm707, %v702, -inf
    %718 = vmax.xlane.f32.xlu0 %v717
    %v719 = vpop.xlane.xlu0 %718
    %v720 = vsel %vm707, %v703, -inf
    %721 = vmax.xlane.f32.xlu0 %v720
    %v722 = vpop.xlane.xlu0 %721
    %v723 = vsel %vm707, %v704, -inf
    %724 = vmax.xlane.f32.xlu0 %v723
    %v725 = vpop.xlane.xlu0 %724
    %v726 = vsel %vm707, %v705, -inf
    %727 = vmax.xlane.f32.xlu0 %v726
    %v728 = vpop.xlane.xlu0 %727
    %v729 = vsel %vm707, %v706, -inf
    %730 = vmax.xlane.f32.xlu0 %v729
    %v731 = vpop.xlane.xlu0 %730
    %v732 = vsub.f32 %v699, %v710
    %v733 = vsub.f32 %v700, %v713
    %v734 = vsub.f32 %v701, %v716
    %v735 = vsub.f32 %v702, %v719
    %v736 = vsub.f32 %v703, %v722
    %v737 = vsub.f32 %v704, %v725
    %v738 = vsub.f32 %v705, %v728
    %v739 = vsub.f32 %v706, %v731
    %v740 = vmul.f32 %v732, 1.442695
    %v741 = vpow.pop %v740
    %v742 = vmul.f32 %v733, 1.442695
    %v743 = vpow.pop %v742
    %v744 = vmul.f32 %v734, 1.442695
    %v745 = vpow.pop %v744
    %v746 = vmul.f32 %v735, 1.442695
    %v747 = vpow.pop %v746
    %v748 = vmul.f32 %v736, 1.442695
    %v749 = vpow.pop %v748
    %v750 = vmul.f32 %v737, 1.442695
    %v751 = vpow.pop %v750
    %v752 = vmul.f32 %v738, 1.442695
    %v753 = vpow.pop %v752
    %v754 = vmul.f32 %v739, 1.442695
    %v755 = vpow.pop %v754
    %v756 = vpack.c.bf16 %v743, %v741
    %v757 = vpack.c.bf16 %v747, %v745
    %v758 = vpack.c.bf16 %v751, %v749
    %v759 = vpack.c.bf16 %v755, %v753
    %v760 = vpack.c.bf16 %v538, %v535
    %v761 = vpack.c.bf16 %v546, %v543
    %v762 = vpack.c.bf16 %v554, %v551
    %v763 = vpack.c.bf16 %v562, %v559
    %v765 = vsel %vm707, %v756, 0
    %v768 = vsel %vm707, %v757, 0
    %v771 = vsel %vm707, %v758, 0
    %v774 = vsel %vm707, %v759, 0
    %776 = vmatprep.subr.bf16.mxu0 0
    %777 = vmatpush1.bf16.msra.mxu0 %v760
    %778 = vmatprep.subr.bf16.mxu0 0
    %779 = vmatpush1.bf16.msra.mxu0 %v761
    %780 = vmatprep.subr.bf16.mxu0 0
    %781 = vmatpush1.bf16.msra.mxu0 %v762
    %782 = vmatprep.subr.bf16.mxu0 0
    %783 = vmatpush1.bf16.msra.mxu0 %v763
    %784 = vmatprep.subr.bf16.mxu0 0
    %785 = vmatpush1.bf16.msra.mxu0 0
    %786 = vmatprep.subr.bf16.mxu0 0
    %787 = vmatpush1.bf16.msra.mxu0 0
    %788 = vmatprep.subr.bf16.mxu0 0
    %789 = vmatpush1.bf16.msra.mxu0 0
    %790 = vmatprep.subr.bf16.mxu0 0
    %791 = vmatpush1.bf16.msra.mxu0 0
    %792 = vmatprep.subr.bf16.mxu0 0
    %793 = vmatpush1.bf16.msra.mxu0 0
    %794 = vmatprep.subr.bf16.mxu0 0
    %795 = vmatpush1.bf16.msra.mxu0 0
    %796 = vmatprep.subr.bf16.mxu0 0
    %797 = vmatpush1.bf16.msra.mxu0 0
    %798 = vmatprep.subr.bf16.mxu0 0
    %799 = vmatpush1.bf16.msra.mxu0 0
    %800 = vmatprep.subr.bf16.mxu0 0
    %801 = vmatpush1.bf16.msra.mxu0 0
    %802 = vmatprep.subr.bf16.mxu0 0
    %803 = vmatpush1.bf16.msra.mxu0 0
    %804 = vmatprep.subr.bf16.mxu0 0
    %805 = vmatpush1.bf16.msra.mxu0 0
    %806 = vmatprep.subr.bf16.mxu0 0
    %807 = vmatpush1.bf16.msra.mxu0 0
    %808 = vmatprep.mubr.bf16.mxu0 0
    %809 = vmatmul.mubr.bf16.gmra.mrb[0].mxu0 %v765
    %v810 = vpop.f32.mrb[0].mxu0
    %v811 = vadd.f32 0.0, %v810
    %v812 = vpop.f32.mrb[0].mxu0
    %v813 = vpop.f32.mrb[0].mxu0
    %v814 = vadd.f32 0.0, %v813
    %v815 = vpop.f32.mrb[0].mxu0
    %816 = vmatprep.mubr.bf16.mxu0 0
    %817 = vmatmul.mubr.bf16.gmra.mrb[0].mxu0 %v768
    %v818 = vpop.f32.mrb[0].mxu0
    %v819 = vadd.f32 0.0, %v818
    %v820 = vpop.f32.mrb[0].mxu0
    %v821 = vpop.f32.mrb[0].mxu0
    %v822 = vadd.f32 0.0, %v821
    %v823 = vpop.f32.mrb[0].mxu0
    %824 = vmatprep.mubr.bf16.mxu0 0
    %825 = vmatmul.mubr.bf16.gmra.mrb[0].mxu0 %v771
    %v826 = vpop.f32.mrb[0].mxu0
    %v827 = vadd.f32 0.0, %v826
    %v828 = vpop.f32.mrb[0].mxu0
    %v829 = vpop.f32.mrb[0].mxu0
    %v830 = vadd.f32 0.0, %v829
    %v831 = vpop.f32.mrb[0].mxu0
    %832 = vmatprep.mubr.bf16.mxu0 0
    %833 = vmatmul.mubr.bf16.gmra.mrb[0].mxu0 %v774
    %v834 = vpop.f32.mrb[0].mxu0
    %v835 = vadd.f32 0.0, %v834
    %v836 = vpop.f32.mrb[0].mxu0
    %v837 = vpop.f32.mrb[0].mxu0
    %v838 = vadd.f32 0.0, %v837
    %v839 = vpop.f32.mrb[0].mxu0
    %840 = vdwg.mxu0
    %v841 = vsel %vm707, %v741, 0.0
    %842 = vadd.xlane.f32.xlu0 %v841
    %v843 = vpop.xlane.xlu0 %842
    %v844 = vsel %vm707, %v743, 0.0
    %845 = vadd.xlane.f32.xlu0 %v844
    %v846 = vpop.xlane.xlu0 %845
    %v847 = vsel %vm707, %v745, 0.0
    %848 = vadd.xlane.f32.xlu0 %v847
    %v849 = vpop.xlane.xlu0 %848
    %v850 = vsel %vm707, %v747, 0.0
    %851 = vadd.xlane.f32.xlu0 %v850
    %v852 = vpop.xlane.xlu0 %851
    %v853 = vsel %vm707, %v749, 0.0
    %854 = vadd.xlane.f32.xlu0 %v853
    %v855 = vpop.xlane.xlu0 %854
    %v856 = vsel %vm707, %v751, 0.0
    %857 = vadd.xlane.f32.xlu0 %v856
    %v858 = vpop.xlane.xlu0 %857
    %v859 = vsel %vm707, %v753, 0.0
    %860 = vadd.xlane.f32.xlu0 %v859
    %v861 = vpop.xlane.xlu0 %860
    %v862 = vsel %vm707, %v755, 0.0
    %863 = vadd.xlane.f32.xlu0 %v862
    %v864 = vpop.xlane.xlu0 %863
    %v865 = vrcp.pop %v843
    %v866 = vrcp.pop %v846
    %v867 = vrcp.pop %v849
    %v868 = vrcp.pop %v852
    %v869 = vrcp.pop %v855
    %v870 = vrcp.pop %v858
    %v871 = vrcp.pop %v861
    %v872 = vrcp.pop %v864
    %v873 = vmul.f32 %v811, %v865
    %v874 = vmul.f32 %v814, %v866
    %v875 = vmul.f32 %v819, %v867
    %v876 = vmul.f32 %v822, %v868
    %v877 = vmul.f32 %v827, %v869
    %v878 = vmul.f32 %v830, %v870
    %v879 = vmul.f32 %v835, %v871
    %v880 = vmul.f32 %v838, %v872
    %v881 = vpack.c.bf16 %v874, %v873
    %v882 = vpack.c.bf16 %v876, %v875
    %v883 = vpack.c.bf16 %v878, %v877
    %v884 = vpack.c.bf16 %v880, %v879
    %v885 = vld [vmem:[%s7] sm:$0xf]
    %v886 = vld [vmem:[%s7 + $0x4] sm:$0xf]
    %v887 = vld [vmem:[%s7 + $0x8] sm:$0xf]
    %v888 = vld [vmem:[%s7 + $0xc] sm:$0xf]
    %v889 = vld [vmem:[%s7 + $0x10] sm:$0xf]
    %v890 = vld [vmem:[%s7 + $0x14] sm:$0xf]
    %v891 = vld [vmem:[%s7 + $0x18] sm:$0xf]
    %v892 = vld [vmem:[%s7 + $0x1c] sm:$0xf]
    %v893 = vld [vmem:[%s7 + $0x20] sm:$0xf]
    %v894 = vld [vmem:[%s7 + $0x24] sm:$0xf]
    %v895 = vld [vmem:[%s7 + $0x28] sm:$0xf]
    %v896 = vld [vmem:[%s7 + $0x2c] sm:$0xf]
    %v897 = vld [vmem:[%s7 + $0x30] sm:$0xf]
    %v898 = vld [vmem:[%s7 + $0x34] sm:$0xf]
    %v899 = vld [vmem:[%s7 + $0x38] sm:$0xf]
    %v900 = vld [vmem:[%s7 + $0x3c] sm:$0xf]
    %v917 = vunpack.c.l.b16 %v885
    %v918 = vunpack.c.l.b16 %v886
    %v919 = vunpack.c.l.b16 %v887
    %v920 = vunpack.c.l.b16 %v888
    %v921 = vunpack.c.l.b16 %v889
    %v922 = vunpack.c.l.b16 %v890
    %v923 = vunpack.c.l.b16 %v891
    %v924 = vunpack.c.l.b16 %v892
    %v925 = vunpack.c.l.b16 %v893
    %v926 = vunpack.c.l.b16 %v894
    %v927 = vunpack.c.l.b16 %v895
    %v928 = vunpack.c.l.b16 %v896
    %v929 = vunpack.c.l.b16 %v897
    %v930 = vunpack.c.l.b16 %v898
    %v931 = vunpack.c.l.b16 %v899
    %v932 = vunpack.c.l.b16 %v900
    %v933 = vpack.c.b16 %v918, %v917
    %v934 = vpack.c.b16 %v920, %v919
    %v935 = vpack.c.b16 %v922, %v921
    %v936 = vpack.c.b16 %v924, %v923
    %v937 = vpack.c.b16 %v926, %v925
    %v938 = vpack.c.b16 %v928, %v927
    %v939 = vpack.c.b16 %v930, %v929
    %v940 = vpack.c.b16 %v932, %v931
    %949 = vmatprep.subr.bf16.mxu0 0
    %950 = vmatpush1.bf16.msra.mxu0 %v933
    %951 = vmatprep.subr.bf16.mxu0 0
    %952 = vmatpush1.bf16.msra.mxu0 %v934
    %953 = vmatprep.subr.bf16.mxu0 0
    %954 = vmatpush1.bf16.msra.mxu0 %v935
    %955 = vmatprep.subr.bf16.mxu0 0
    %956 = vmatpush1.bf16.msra.mxu0 %v936
    %957 = vmatprep.subr.bf16.mxu0 0
    %958 = vmatpush1.bf16.msra.mxu0 %v937
    %959 = vmatprep.subr.bf16.mxu0 0
    %960 = vmatpush1.bf16.msra.mxu0 %v938
    %961 = vmatprep.subr.bf16.mxu0 0
    %962 = vmatpush1.bf16.msra.mxu0 %v939
    %963 = vmatprep.subr.bf16.mxu0 0
    %964 = vmatpush1.bf16.msra.mxu0 %v940
    %965 = vmatprep.subr.bf16.mxu0 0
    %966 = vmatpush1.bf16.msra.mxu0 0
    %967 = vmatprep.subr.bf16.mxu0 0
    %968 = vmatpush1.bf16.msra.mxu0 0
    %969 = vmatprep.subr.bf16.mxu0 0
    %970 = vmatpush1.bf16.msra.mxu0 0
    %971 = vmatprep.subr.bf16.mxu0 0
    %972 = vmatpush1.bf16.msra.mxu0 0
    %973 = vmatprep.subr.bf16.mxu0 0
    %974 = vmatpush1.bf16.msra.mxu0 0
    %975 = vmatprep.subr.bf16.mxu0 0
    %976 = vmatpush1.bf16.msra.mxu0 0
    %977 = vmatprep.subr.bf16.mxu0 0
    %978 = vmatpush1.bf16.msra.mxu0 0
    %979 = vmatprep.subr.bf16.mxu0 0
    %980 = vmatpush1.bf16.msra.mxu0 0
    %981 = vmatprep.mubr.bf16.mxu0 0
    %982 = vmatmul.mubr.bf16.gmra.mrb[0].mxu0 %v881
    %v983 = vpop.f32.mrb[0].mxu0
    %v984 = vadd.f32 0.0, %v983
    %v985 = vpop.f32.mrb[0].mxu0
    %v986 = vpop.f32.mrb[0].mxu0
    %v987 = vadd.f32 0.0, %v986
    %v988 = vpop.f32.mrb[0].mxu0
    %989 = vmatprep.mubr.bf16.mxu0 0
    %990 = vmatmul.mubr.bf16.gmra.mrb[0].mxu0 %v882
    %v991 = vpop.f32.mrb[0].mxu0
    %v992 = vadd.f32 0.0, %v991
    %v993 = vpop.f32.mrb[0].mxu0
    %v994 = vpop.f32.mrb[0].mxu0
    %v995 = vadd.f32 0.0, %v994
    %v996 = vpop.f32.mrb[0].mxu0
    %997 = vmatprep.mubr.bf16.mxu0 0
    %998 = vmatmul.mubr.bf16.gmra.mrb[0].mxu0 %v883
    %v999 = vpop.f32.mrb[0].mxu0
    %v1000 = vadd.f32 0.0, %v999
    %v1001 = vpop.f32.mrb[0].mxu0
    %v1002 = vpop.f32.mrb[0].mxu0
    %v1003 = vadd.f32 0.0, %v1002
    %v1004 = vpop.f32.mrb[0].mxu0
    %1005 = vmatprep.mubr.bf16.mxu0 0
    %1006 = vmatmul.mubr.bf16.gmra.mrb[0].mxu0 %v884
    %v1007 = vpop.f32.mrb[0].mxu0
    %v1008 = vadd.f32 0.0, %v1007
    %v1009 = vpop.f32.mrb[0].mxu0
    %v1010 = vpop.f32.mrb[0].mxu0
    %v1011 = vadd.f32 0.0, %v1010
    %v1012 = vpop.f32.mrb[0].mxu0
    %1013 = vdwg.mxu0
    %v1014 = vadd.f32 %v225, %v984
    %v1015 = vadd.f32 %v230, %v987
    %v1016 = vadd.f32 %v235, %v992
    %v1017 = vadd.f32 %v240, %v995
    %v1018 = vadd.f32 %v245, %v1000
    %v1019 = vadd.f32 %v250, %v1003
    %v1020 = vadd.f32 %v255, %v1008
    %v1021 = vadd.f32 %v260, %v1011
    %v1022 = vpack.c.bf16 %v1015, %v1014
    %v1023 = vpack.c.bf16 %v1017, %v1016
    %v1024 = vpack.c.bf16 %v1019, %v1018
    %v1025 = vpack.c.bf16 %v1021, %v1020
    %v1026 = vld [vmem:[#allocation6] sm:$0xff]
    %v1027 = vld [vmem:[#allocation6 + $0x8] sm:$0xff]
    %v1028 = vld [vmem:[#allocation6 + $0x10] sm:$0xff]
    %v1029 = vld [vmem:[#allocation6 + $0x18] sm:$0xff]
    %v1030 = vld [vmem:[#allocation6 + $0x20] sm:$0xff]
    %v1031 = vld [vmem:[#allocation6 + $0x28] sm:$0xff]
    %v1032 = vld [vmem:[#allocation6 + $0x30] sm:$0xff]
    %v1033 = vld [vmem:[#allocation6 + $0x38] sm:$0xff]
    %v1034 = vld [vmem:[#allocation6 + $0x40] sm:$0xff]
    %v1035 = vld [vmem:[#allocation6 + $0x48] sm:$0xff]
    %v1036 = vld [vmem:[#allocation6 + $0x50] sm:$0xff]
    %v1037 = vld [vmem:[#allocation6 + $0x58] sm:$0xff]
    %v1038 = vld [vmem:[#allocation6 + $0x60] sm:$0xff]
    %v1039 = vld [vmem:[#allocation6 + $0x68] sm:$0xff]
    %v1040 = vld [vmem:[#allocation6 + $0x70] sm:$0xff]
    %v1041 = vld [vmem:[#allocation6 + $0x78] sm:$0xff]
    %v1058 = vunpack.c.l.b16 %v1026
    %v1059 = vunpack.c.h.b16 %v1026
    %v1060 = vunpack.c.l.b16 %v1027
    %v1061 = vunpack.c.h.b16 %v1027
    %v1062 = vunpack.c.l.b16 %v1028
    %v1063 = vunpack.c.h.b16 %v1028
    %v1064 = vunpack.c.l.b16 %v1029
    %v1065 = vunpack.c.h.b16 %v1029
    %v1066 = vunpack.c.l.b16 %v1030
    %v1067 = vunpack.c.h.b16 %v1030
    %v1068 = vunpack.c.l.b16 %v1031
    %v1069 = vunpack.c.h.b16 %v1031
    %v1070 = vunpack.c.l.b16 %v1032
    %v1071 = vunpack.c.h.b16 %v1032
    %v1072 = vunpack.c.l.b16 %v1033
    %v1073 = vunpack.c.h.b16 %v1033
    %v1074 = vunpack.c.l.b16 %v1034
    %v1075 = vunpack.c.h.b16 %v1034
    %v1076 = vunpack.c.l.b16 %v1035
    %v1077 = vunpack.c.h.b16 %v1035
    %v1078 = vunpack.c.l.b16 %v1036
    %v1079 = vunpack.c.h.b16 %v1036
    %v1080 = vunpack.c.l.b16 %v1037
    %v1081 = vunpack.c.h.b16 %v1037
    %v1082 = vunpack.c.l.b16 %v1038
    %v1083 = vunpack.c.h.b16 %v1038
    %v1084 = vunpack.c.l.b16 %v1039
    %v1085 = vunpack.c.h.b16 %v1039
    %v1086 = vunpack.c.l.b16 %v1040
    %v1087 = vunpack.c.h.b16 %v1040
    %v1088 = vunpack.c.l.b16 %v1041
    %v1089 = vunpack.c.h.b16 %v1041
    %v1090 = vpack.c.b16 %v1060, %v1058
    %v1091 = vpack.c.b16 %v1061, %v1059
    %v1092 = vpack.c.b16 %v1064, %v1062
    %v1093 = vpack.c.b16 %v1065, %v1063
    %v1094 = vpack.c.b16 %v1068, %v1066
    %v1095 = vpack.c.b16 %v1069, %v1067
    %v1096 = vpack.c.b16 %v1072, %v1070
    %v1097 = vpack.c.b16 %v1073, %v1071
    %v1098 = vpack.c.b16 %v1076, %v1074
    %v1099 = vpack.c.b16 %v1077, %v1075
    %v1100 = vpack.c.b16 %v1080, %v1078
    %v1101 = vpack.c.b16 %v1081, %v1079
    %v1102 = vpack.c.b16 %v1084, %v1082
    %v1103 = vpack.c.b16 %v1085, %v1083
    %v1104 = vpack.c.b16 %v1088, %v1086
    %v1105 = vpack.c.b16 %v1089, %v1087
    %1122 = vmatprep.subr.bf16.mxu0 %v1091
    %1123 = vmatpush1.bf16.msra.mxu0 %v1090
    %1124 = vmatprep.subr.bf16.mxu0 %v1093
    %1125 = vmatpush1.bf16.msra.mxu0 %v1092
    %1126 = vmatprep.subr.bf16.mxu0 %v1095
    %1127 = vmatpush1.bf16.msra.mxu0 %v1094
    %1128 = vmatprep.subr.bf16.mxu0 %v1097
    %1129 = vmatpush1.bf16.msra.mxu0 %v1096
    %1130 = vmatprep.subr.bf16.mxu0 %v1099
    %1131 = vmatpush1.bf16.msra.mxu0 %v1098
    %1132 = vmatprep.subr.bf16.mxu0 %v1101
    %1133 = vmatpush1.bf16.msra.mxu0 %v1100
    %1134 = vmatprep.subr.bf16.mxu0 %v1103
    %1135 = vmatpush1.bf16.msra.mxu0 %v1102
    %1136 = vmatprep.subr.bf16.mxu0 %v1105
    %1137 = vmatpush1.bf16.msra.mxu0 %v1104
    %1138 = vmatprep.subr.bf16.mxu0 0
    %1139 = vmatpush1.bf16.msra.mxu0 0
    %1140 = vmatprep.subr.bf16.mxu0 0
    %1141 = vmatpush1.bf16.msra.mxu0 0
    %1142 = vmatprep.subr.bf16.mxu0 0
    %1143 = vmatpush1.bf16.msra.mxu0 0
    %1144 = vmatprep.subr.bf16.mxu0 0
    %1145 = vmatpush1.bf16.msra.mxu0 0
    %1146 = vmatprep.subr.bf16.mxu0 0
    %1147 = vmatpush1.bf16.msra.mxu0 0
    %1148 = vmatprep.subr.bf16.mxu0 0
    %1149 = vmatpush1.bf16.msra.mxu0 0
    %1150 = vmatprep.subr.bf16.mxu0 0
    %1151 = vmatpush1.bf16.msra.mxu0 0
    %1152 = vmatprep.subr.bf16.mxu0 0
    %1153 = vmatpush1.bf16.msra.mxu0 0
    %1154 = vmatprep.mubr.bf16.mxu0 0
    %1155 = vmatmul.mubr.bf16.gmra.mrb[0].mxu0 %v1022
    %v1156 = vpop.f32.mrb[0].mxu0
    %v1157 = vadd.f32 0.0, %v1156
    %v1158 = vpop.f32.mrb[0].mxu0
    %v1159 = vadd.f32 0.0, %v1158
    %v1160 = vpop.f32.mrb[0].mxu0
    %v1161 = vadd.f32 0.0, %v1160
    %v1162 = vpop.f32.mrb[0].mxu0
    %v1163 = vadd.f32 0.0, %v1162
    %1164 = vmatprep.mubr.bf16.mxu0 0
    %1165 = vmatmul.mubr.bf16.gmra.mrb[0].mxu0 %v1023
    %v1166 = vpop.f32.mrb[0].mxu0
    %v1167 = vadd.f32 0.0, %v1166
    %v1168 = vpop.f32.mrb[0].mxu0
    %v1169 = vadd.f32 0.0, %v1168
    %v1170 = vpop.f32.mrb[0].mxu0
    %v1171 = vadd.f32 0.0, %v1170
    %v1172 = vpop.f32.mrb[0].mxu0
    %v1173 = vadd.f32 0.0, %v1172
    %1174 = vmatprep.mubr.bf16.mxu0 0
    %1175 = vmatmul.mubr.bf16.gmra.mrb[0].mxu0 %v1024
    %v1176 = vpop.f32.mrb[0].mxu0
    %v1177 = vadd.f32 0.0, %v1176
    %v1178 = vpop.f32.mrb[0].mxu0
    %v1179 = vadd.f32 0.0, %v1178
    %v1180 = vpop.f32.mrb[0].mxu0
    %v1181 = vadd.f32 0.0, %v1180
    %v1182 = vpop.f32.mrb[0].mxu0
    %v1183 = vadd.f32 0.0, %v1182
    %1184 = vmatprep.mubr.bf16.mxu0 0
    %1185 = vmatmul.mubr.bf16.gmra.mrb[0].mxu0 %v1025
    %v1186 = vpop.f32.mrb[0].mxu0
    %v1187 = vadd.f32 0.0, %v1186
    %v1188 = vpop.f32.mrb[0].mxu0
    %v1189 = vadd.f32 0.0, %v1188
    %v1190 = vpop.f32.mrb[0].mxu0
    %v1191 = vadd.f32 0.0, %v1190
    %v1192 = vpop.f32.mrb[0].mxu0
    %v1193 = vadd.f32 0.0, %v1192
    %1194 = vdwg.mxu0
    %v1195 = vtanh.pop %v1157
    %v1196 = vtanh.pop %v1159
    %v1197 = vtanh.pop %v1161
    %v1198 = vtanh.pop %v1163
    %v1199 = vtanh.pop %v1167
    %v1200 = vtanh.pop %v1169
    %v1201 = vtanh.pop %v1171
    %v1202 = vtanh.pop %v1173
    %v1203 = vtanh.pop %v1177
    %v1204 = vtanh.pop %v1179
    %v1205 = vtanh.pop %v1181
    %v1206 = vtanh.pop %v1183
    %v1207 = vtanh.pop %v1187
    %v1208 = vtanh.pop %v1189
    %v1209 = vtanh.pop %v1191
    %v1210 = vtanh.pop %v1193
    %v1211 = vpack.c.bf16 %v1197, %v1195
    %v1212 = vpack.c.bf16 %v1198, %v1196
    %v1213 = vpack.c.bf16 %v1201, %v1199
    %v1214 = vpack.c.bf16 %v1202, %v1200
    %v1215 = vpack.c.bf16 %v1205, %v1203
    %v1216 = vpack.c.bf16 %v1206, %v1204
    %v1217 = vpack.c.bf16 %v1209, %v1207
    %v1218 = vpack.c.bf16 %v1210, %v1208
    %v1219 = vld [vmem:[#allocation8] sm:$0xf]
    %v1220 = vld [vmem:[#allocation8 + $0x4] sm:$0xf]
    %v1221 = vld [vmem:[#allocation8 + $0x8] sm:$0xf]
    %v1222 = vld [vmem:[#allocation8 + $0xc] sm:$0xf]
    %v1223 = vld [vmem:[#allocation8 + $0x10] sm:$0xf]
    %v1224 = vld [vmem:[#allocation8 + $0x14] sm:$0xf]
    %v1225 = vld [vmem:[#allocation8 + $0x18] sm:$0xf]
    %v1226 = vld [vmem:[#allocation8 + $0x1c] sm:$0xf]
    %v1227 = vld [vmem:[#allocation8 + $0x20] sm:$0xf]
    %v1228 = vld [vmem:[#allocation8 + $0x24] sm:$0xf]
    %v1229 = vld [vmem:[#allocation8 + $0x28] sm:$0xf]
    %v1230 = vld [vmem:[#allocation8 + $0x2c] sm:$0xf]
    %v1231 = vld [vmem:[#allocation8 + $0x30] sm:$0xf]
    %v1232 = vld [vmem:[#allocation8 + $0x34] sm:$0xf]
    %v1233 = vld [vmem:[#allocation8 + $0x38] sm:$0xf]
    %v1234 = vld [vmem:[#allocation8 + $0x3c] sm:$0xf]
    %v1235 = vld [vmem:[#allocation8 + $0x40] sm:$0xf]
    %v1236 = vld [vmem:[#allocation8 + $0x44] sm:$0xf]
    %v1237 = vld [vmem:[#allocation8 + $0x48] sm:$0xf]
    %v1238 = vld [vmem:[#allocation8 + $0x4c] sm:$0xf]
    %v1239 = vld [vmem:[#allocation8 + $0x50] sm:$0xf]
    %v1240 = vld [vmem:[#allocation8 + $0x54] sm:$0xf]
    %v1241 = vld [vmem:[#allocation8 + $0x58] sm:$0xf]
    %v1242 = vld [vmem:[#allocation8 + $0x5c] sm:$0xf]
    %v1243 = vld [vmem:[#allocation8 + $0x60] sm:$0xf]
    %v1244 = vld [vmem:[#allocation8 + $0x64] sm:$0xf]
    %v1245 = vld [vmem:[#allocation8 + $0x68] sm:$0xf]
    %v1246 = vld [vmem:[#allocation8 + $0x6c] sm:$0xf]
    %v1247 = vld [vmem:[#allocation8 + $0x70] sm:$0xf]
    %v1248 = vld [vmem:[#allocation8 + $0x74] sm:$0xf]
    %v1249 = vld [vmem:[#allocation8 + $0x78] sm:$0xf]
    %v1250 = vld [vmem:[#allocation8 + $0x7c] sm:$0xf]
    %v1283 = vunpack.c.l.b16 %v1219
    %v1284 = vunpack.c.l.b16 %v1220
    %v1285 = vunpack.c.l.b16 %v1221
    %v1286 = vunpack.c.l.b16 %v1222
    %v1287 = vunpack.c.l.b16 %v1223
    %v1288 = vunpack.c.l.b16 %v1224
    %v1289 = vunpack.c.l.b16 %v1225
    %v1290 = vunpack.c.l.b16 %v1226
    %v1291 = vunpack.c.l.b16 %v1227
    %v1292 = vunpack.c.l.b16 %v1228
    %v1293 = vunpack.c.l.b16 %v1229
    %v1294 = vunpack.c.l.b16 %v1230
    %v1295 = vunpack.c.l.b16 %v1231
    %v1296 = vunpack.c.l.b16 %v1232
    %v1297 = vunpack.c.l.b16 %v1233
    %v1298 = vunpack.c.l.b16 %v1234
    %v1299 = vunpack.c.l.b16 %v1235
    %v1300 = vunpack.c.l.b16 %v1236
    %v1301 = vunpack.c.l.b16 %v1237
    %v1302 = vunpack.c.l.b16 %v1238
    %v1303 = vunpack.c.l.b16 %v1239
    %v1304 = vunpack.c.l.b16 %v1240
    %v1305 = vunpack.c.l.b16 %v1241
    %v1306 = vunpack.c.l.b16 %v1242
    %v1307 = vunpack.c.l.b16 %v1243
    %v1308 = vunpack.c.l.b16 %v1244
    %v1309 = vunpack.c.l.b16 %v1245
    %v1310 = vunpack.c.l.b16 %v1246
    %v1311 = vunpack.c.l.b16 %v1247
    %v1312 = vunpack.c.l.b16 %v1248
    %v1313 = vunpack.c.l.b16 %v1249
    %v1314 = vunpack.c.l.b16 %v1250
    %v1315 = vpack.c.b16 %v1284, %v1283
    %v1316 = vpack.c.b16 %v1286, %v1285
    %v1317 = vpack.c.b16 %v1288, %v1287
    %v1318 = vpack.c.b16 %v1290, %v1289
    %v1319 = vpack.c.b16 %v1292, %v1291
    %v1320 = vpack.c.b16 %v1294, %v1293
    %v1321 = vpack.c.b16 %v1296, %v1295
    %v1322 = vpack.c.b16 %v1298, %v1297
    %v1323 = vpack.c.b16 %v1300, %v1299
    %v1324 = vpack.c.b16 %v1302, %v1301
    %v1325 = vpack.c.b16 %v1304, %v1303
    %v1326 = vpack.c.b16 %v1306, %v1305
    %v1327 = vpack.c.b16 %v1308, %v1307
    %v1328 = vpack.c.b16 %v1310, %v1309
    %v1329 = vpack.c.b16 %v1312, %v1311
    %v1330 = vpack.c.b16 %v1314, %v1313
    %1347 = vmatprep.subr.bf16.mxu0 0
    %1348 = vmatpush1.bf16.msra.mxu0 %v1315
    %1349 = vmatprep.subr.bf16.mxu0 0
    %1350 = vmatpush1.bf16.msra.mxu0 %v1316
    %1351 = vmatprep.subr.bf16.mxu0 0
    %1352 = vmatpush1.bf16.msra.mxu0 %v1317
    %1353 = vmatprep.subr.bf16.mxu0 0
    %1354 = vmatpush1.bf16.msra.mxu0 %v1318
    %1355 = vmatprep.subr.bf16.mxu0 0
    %1356 = vmatpush1.bf16.msra.mxu0 %v1319
    %1357 = vmatprep.subr.bf16.mxu0 0
    %1358 = vmatpush1.bf16.msra.mxu0 %v1320
    %1359 = vmatprep.subr.bf16.mxu0 0
    %1360 = vmatpush1.bf16.msra.mxu0 %v1321
    %1361 = vmatprep.subr.bf16.mxu0 0
    %1362 = vmatpush1.bf16.msra.mxu0 %v1322
    %1363 = vmatprep.subr.bf16.mxu0 0
    %1364 = vmatpush1.bf16.msra.mxu0 %v1323
    %1365 = vmatprep.subr.bf16.mxu0 0
    %1366 = vmatpush1.bf16.msra.mxu0 %v1324
    %1367 = vmatprep.subr.bf16.mxu0 0
    %1368 = vmatpush1.bf16.msra.mxu0 %v1325
    %1369 = vmatprep.subr.bf16.mxu0 0
    %1370 = vmatpush1.bf16.msra.mxu0 %v1326
    %1371 = vmatprep.subr.bf16.mxu0 0
    %1372 = vmatpush1.bf16.msra.mxu0 %v1327
    %1373 = vmatprep.subr.bf16.mxu0 0
    %1374 = vmatpush1.bf16.msra.mxu0 %v1328
    %1375 = vmatprep.subr.bf16.mxu0 0
    %1376 = vmatpush1.bf16.msra.mxu0 %v1329
    %1377 = vmatprep.subr.bf16.mxu0 0
    %1378 = vmatpush1.bf16.msra.mxu0 %v1330
    %1379 = vmatprep.mubr.bf16.mxu0 %v1212
    %1380 = vmatmul.mubr.bf16.gmra.mrb[0].mxu0 %v1211
    %v1381 = vpop.f32.mrb[0].mxu0
    %v1382 = vadd.f32 0.0, %v1381
    %v1383 = vpop.f32.mrb[0].mxu0
    %v1384 = vpop.f32.mrb[0].mxu0
    %v1385 = vadd.f32 0.0, %v1384
    %v1386 = vpop.f32.mrb[0].mxu0
    %1387 = vmatprep.mubr.bf16.mxu0 %v1214
    %1388 = vmatmul.mubr.bf16.gmra.mrb[0].mxu0 %v1213
    %v1389 = vpop.f32.mrb[0].mxu0
    %v1390 = vadd.f32 0.0, %v1389
    %v1391 = vpop.f32.mrb[0].mxu0
    %v1392 = vpop.f32.mrb[0].mxu0
    %v1393 = vadd.f32 0.0, %v1392
    %v1394 = vpop.f32.mrb[0].mxu0
    %1395 = vmatprep.mubr.bf16.mxu0 %v1216
    %1396 = vmatmul.mubr.bf16.gmra.mrb[0].mxu0 %v1215
    %v1397 = vpop.f32.mrb[0].mxu0
    %v1398 = vadd.f32 0.0, %v1397
    %v1399 = vpop.f32.mrb[0].mxu0
    %v1400 = vpop.f32.mrb[0].mxu0
    %v1401 = vadd.f32 0.0, %v1400
    %v1402 = vpop.f32.mrb[0].mxu0
    %1403 = vmatprep.mubr.bf16.mxu0 %v1218
    %1404 = vmatmul.mubr.bf16.gmra.mrb[0].mxu0 %v1217
    %v1405 = vpop.f32.mrb[0].mxu0
    %v1406 = vadd.f32 0.0, %v1405
    %v1407 = vpop.f32.mrb[0].mxu0
    %v1408 = vpop.f32.mrb[0].mxu0
    %v1409 = vadd.f32 0.0, %v1408
    %v1410 = vpop.f32.mrb[0].mxu0
    %1411 = vdwg.mxu0
    %v1412 = vadd.f32 %v1014, %v1382
    %v1413 = vadd.f32 %v1015, %v1385
    %v1414 = vadd.f32 %v1016, %v1390
    %v1415 = vadd.f32 %v1017, %v1393
    %v1416 = vadd.f32 %v1018, %v1398
    %v1417 = vadd.f32 %v1019, %v1401
    %v1418 = vadd.f32 %v1020, %v1406
    %v1419 = vadd.f32 %v1021, %v1409
    %v1420 = vlaneseq
    %v1421 = vshrl.u32 %v1420, 7
    %vm1422 = vcmp.eq.s32.totalorder %v1421, %v674
    %v1423 = vld [vmem:[%s4] sm:$0x1]
    %v1425 = vlaneseq
    %v1426 = vshrl.u32 %v1425, 7
    %v1427 = vsub.s32 0, %v1426
    %v1428 = vrot.slane %v1423, %v1427
    %v1430 = vsel %vm1422, %v1428, 0.0
    %v1432 = vsel %vm707, %v1430, 0
    %1434 = vmatprep.subr.mxu0 0.0
    %1435 = vmatpush1.msra.mxu0 %v1412
    %1436 = vmatprep.subr.mxu0 0.0
    %1437 = vmatpush1.msra.mxu0 %v1413
    %1438 = vmatprep.subr.mxu0 0.0
    %1439 = vmatpush1.msra.mxu0 %v1414
    %1440 = vmatprep.subr.mxu0 0.0
    %1441 = vmatpush1.msra.mxu0 %v1415
    %1442 = vmatprep.subr.mxu0 0.0
    %1443 = vmatpush1.msra.mxu0 %v1416
    %1444 = vmatprep.subr.mxu0 0.0
    %1445 = vmatpush1.msra.mxu0 %v1417
    %1446 = vmatprep.subr.mxu0 0.0
    %1447 = vmatpush1.msra.mxu0 %v1418
    %1448 = vmatprep.subr.mxu0 0.0
    %1449 = vmatpush1.msra.mxu0 %v1419
    %1450 = vmatprep.subr.mxu0 0.0
    %1451 = vmatpush1.msra.mxu0 0.0
    %1452 = vmatprep.subr.mxu0 0.0
    %1453 = vmatpush1.msra.mxu0 0.0
    %1454 = vmatprep.subr.mxu0 0.0
    %1455 = vmatpush1.msra.mxu0 0.0
    %1456 = vmatprep.subr.mxu0 0.0
    %1457 = vmatpush1.msra.mxu0 0.0
    %1458 = vmatprep.subr.mxu0 0.0
    %1459 = vmatpush1.msra.mxu0 0.0
    %1460 = vmatprep.subr.mxu0 0.0
    %1461 = vmatpush1.msra.mxu0 0.0
    %1462 = vmatprep.subr.mxu0 0.0
    %1463 = vmatpush1.msra.mxu0 0.0
    %1464 = vmatprep.subr.mxu0 0.0
    %1465 = vmatpush1.msra.mxu0 0.0
    %1466 = vmatprep.subr.mxu0 0.0
    %1467 = vmatpush1.msra.mxu0 0.0
    %1468 = vmatprep.subr.mxu0 0.0
    %1469 = vmatpush1.msra.mxu0 0.0
    %1470 = vmatprep.subr.mxu0 0.0
    %1471 = vmatpush1.msra.mxu0 0.0
    %1472 = vmatprep.subr.mxu0 0.0
    %1473 = vmatpush1.msra.mxu0 0.0
    %1474 = vmatprep.subr.mxu0 0.0
    %1475 = vmatpush1.msra.mxu0 0.0
    %1476 = vmatprep.subr.mxu0 0.0
    %1477 = vmatpush1.msra.mxu0 0.0
    %1478 = vmatprep.subr.mxu0 0.0
    %1479 = vmatpush1.msra.mxu0 0.0
    %1480 = vmatprep.subr.mxu0 0.0
    %1481 = vmatpush1.msra.mxu0 0.0
    %1482 = vmatprep.subr.mxu0 0.0
    %1483 = vmatpush1.msra.mxu0 0.0
    %1484 = vmatprep.subr.mxu0 0.0
    %1485 = vmatpush1.msra.mxu0 0.0
    %1486 = vmatprep.subr.mxu0 0.0
    %1487 = vmatpush1.msra.mxu0 0.0
    %1488 = vmatprep.subr.mxu0 0.0
    %1489 = vmatpush1.msra.mxu0 0.0
    %1490 = vmatprep.subr.mxu0 0.0
    %1491 = vmatpush1.msra.mxu0 0.0
    %1492 = vmatprep.subr.mxu0 0.0
    %1493 = vmatpush1.msra.mxu0 0.0
    %1494 = vmatprep.subr.mxu0 0.0
    %1495 = vmatpush1.msra.mxu0 0.0
    %1496 = vmatprep.subr.mxu0 0.0
    %1497 = vmatpush1.msra.mxu0 0.0
    %1498 = vmatprep.mubr.f32.mxu0 0.0
    %1499 = vmatmul.mubr.f32.gmra.mrb[0].mxu0 %v1432
    %v1500 = vpop.f32.mrb[0].mxu0
    %v1501 = vadd.f32 0.0, %v1500
    %v1502 = vpop.f32.mrb[0].mxu0
    %1503 = vdwg.mxu0
    %1504 = vst [vmem:[#allocation11] sm:$0x3] %v1501
    %1505 = vst [vmem:[#allocation13 - $0x2] sm:$0x3c] %v1501
    %v1506 = vmul.f32 %v1501, %v1501
    %vm1507 = vcmask 1041408
    %v1508 = vsel %vm1507, %v1506, 0.0
    %1509 = vadd.xlane.f32.xlu0 %v1508
    %v1510 = vpop.xlane.xlu0 %1509
    %v1511 = vmax.f32 %v1510, 1e-24
    %v1512 = vrsqrt.pop %v1511
    %v1513 = vmul.f32 %v1501, %v1512
    %vm1514 = vcmask 1045506
    %v1515 = vsel %vm1514, %v1506, 0.0
    %1516 = vadd.xlane.f32.xlu0 %v1515
    %v1517 = vpop.xlane.xlu0 %1516
    %v1518 = vmax.f32 %v1517, 1e-24
    %v1519 = vrsqrt.pop %v1518
    %v1520 = vmul.f32 %v1501, %v1519
    %v1522 = vrot.slane %v1520, 2
    %1524 = vmatprep.subr.mxu0 0.0
    %1525 = vmatpush1.xpose.msra.mxu0 %v1522
    %1526 = vmatprep.subr.mxu0 0.0
    %1527 = vmatpush1.xpose.msra.mxu0 0.0
    %1528 = vmatprep.subr.mxu0 0.0
    %1529 = vmatpush1.xpose.msra.mxu0 0.0
    %1530 = vmatprep.subr.mxu0 0.0
    %1531 = vmatpush1.xpose.msra.mxu0 0.0
    %1532 = vmatprep.subr.mxu0 0.0
    %1533 = vmatpush1.xpose.msra.mxu0 0.0
    %1534 = vmatprep.subr.mxu0 0.0
    %1535 = vmatpush1.xpose.msra.mxu0 0.0
    %1536 = vmatprep.subr.mxu0 0.0
    %1537 = vmatpush1.xpose.msra.mxu0 0.0
    %1538 = vmatprep.subr.mxu0 0.0
    %1539 = vmatpush1.xpose.msra.mxu0 0.0
    %1540 = vmatprep.subr.mxu0 0.0
    %1541 = vmatpush1.xpose.msra.mxu0 0.0
    %1542 = vmatprep.subr.mxu0 0.0
    %1543 = vmatpush1.xpose.msra.mxu0 0.0
    %1544 = vmatprep.subr.mxu0 0.0
    %1545 = vmatpush1.xpose.msra.mxu0 0.0
    %1546 = vmatprep.subr.mxu0 0.0
    %1547 = vmatpush1.xpose.msra.mxu0 0.0
    %1548 = vmatprep.subr.mxu0 0.0
    %1549 = vmatpush1.xpose.msra.mxu0 0.0
    %1550 = vmatprep.subr.mxu0 0.0
    %1551 = vmatpush1.xpose.msra.mxu0 0.0
    %1552 = vmatprep.subr.mxu0 0.0
    %1553 = vmatpush1.xpose.msra.mxu0 0.0
    %1554 = vmatprep.subr.mxu0 0.0
    %1555 = vmatpush1.xpose.msra.mxu0 0.0
    %1556 = vmatprep.subr.mxu0 0.0
    %1557 = vmatpush1.xpose.msra.mxu0 0.0
    %1558 = vmatprep.subr.mxu0 0.0
    %1559 = vmatpush1.xpose.msra.mxu0 0.0
    %1560 = vmatprep.subr.mxu0 0.0
    %1561 = vmatpush1.xpose.msra.mxu0 0.0
    %1562 = vmatprep.subr.mxu0 0.0
    %1563 = vmatpush1.xpose.msra.mxu0 0.0
    %1564 = vmatprep.subr.mxu0 0.0
    %1565 = vmatpush1.xpose.msra.mxu0 0.0
    %1566 = vmatprep.subr.mxu0 0.0
    %1567 = vmatpush1.xpose.msra.mxu0 0.0
    %1568 = vmatprep.subr.mxu0 0.0
    %1569 = vmatpush1.xpose.msra.mxu0 0.0
    %1570 = vmatprep.subr.mxu0 0.0
    %1571 = vmatpush1.xpose.msra.mxu0 0.0
    %1572 = vmatprep.subr.mxu0 0.0
    %1573 = vmatpush1.xpose.msra.mxu0 0.0
    %1574 = vmatprep.subr.mxu0 0.0
    %1575 = vmatpush1.xpose.msra.mxu0 0.0
    %1576 = vmatprep.subr.mxu0 0.0
    %1577 = vmatpush1.xpose.msra.mxu0 0.0
    %1578 = vmatprep.subr.mxu0 0.0
    %1579 = vmatpush1.xpose.msra.mxu0 0.0
    %1580 = vmatprep.subr.mxu0 0.0
    %1581 = vmatpush1.xpose.msra.mxu0 0.0
    %1582 = vmatprep.subr.mxu0 0.0
    %1583 = vmatpush1.xpose.msra.mxu0 0.0
    %1584 = vmatprep.subr.mxu0 0.0
    %1585 = vmatpush1.xpose.msra.mxu0 0.0
    %1586 = vmatprep.subr.mxu0 0.0
    %1587 = vmatpush1.xpose.msra.mxu0 0.0
    %1588 = vmatprep.mubr.f32.mxu0 0.0
    %1589 = vmatmul.mubr.f32.gmra.mrb[0].mxu0 %v1513
    %v1590 = vpop.f32.mrb[0].mxu0
    %v1591 = vadd.f32 0.0, %v1590
    %v1592 = vpop.f32.mrb[0].mxu0
    %1593 = vdwg.mxu0
    %vm1594 = vcmask 25600
    %1595 = vst.msk [vmem:[#allocation10] sm:$0x3] %vm1594, %v1591
    %v1596 = vsel %vm1594, %v1591, -inf
    %1597 = vmax.xlane.f32.xlu0 %v1596
    %v1598 = vpop.xlane.xlu0 %1597
    %v1599 = vsub.f32 %v1591, %v1598
    %v1600 = vmul.f32 %v1599, 1.442695
    %v1601 = vpow.pop %v1600
    %v1602 = vsel %vm1594, %v1601, 0.0
    %1603 = vadd.xlane.f32.xlu0 %v1602
    %v1604 = vpop.xlane.xlu0 %1603
    %v1605 = vlog2.pop %v1604
    %v1606 = vmul.f32 %v1605, 0.6931472
    %v1607 = vadd.f32 %v1598, %v1606
    %v1608 = vmul.u32 %v1421, 2
    %vm1609 = vcmp.eq.s32.totalorder %v93, %v1608
    %v1610 = vsel %vm1609, %v1591, 0.0
    %v1611 = vsel %vm1594, %v1610, 0.0
    %1612 = vadd.xlane.f32.xlu0 %v1611
    %v1613 = vpop.xlane.xlu0 %1612
    %v1614 = vsub.f32 %v1607, %v1613
    %vm1615 = vcmask 1024
    %v1616 = vsel %vm1615, %v1614, 0.0
    %1617 = vadd.xlane.f32.xlu0 %v1616
    %v1618 = vpop.xlane.xlu0 %1617
    %v1619 = vrot.slane %v1618, 4
    %v1620 = vadd.f32 %v1618, %v1619
    %v1621 = vrot.slane %v1620, 2
    %v1622 = vadd.f32 %v1620, %v1621
    %v1623 = vrot.slane %v1622, 1
    %v1624 = vadd.f32 %v1622, %v1623
    %s1625 = vtos %v1624
    %s1626 = smul.f32 %s1625, 0.5
    %s1627 = scalar_lea.smem [#allocation9], 0
    %1628 = sst [smem:[%s1627]] %s1626
    // Predicated region
    $region54: #{forward.1} parent=1 // pred_check
      _
    $region55: #{forward.1} parent=1 // pred_check_branch
      %1630 = sbr.rel (0) target = $region57
    $region56: #{forward.1} parent=1 // pred_region
      %s1632 = ssub.s32 16, 16
      %1633 = vsyncadd [#allocation5], %s1632
      %1636 = dma.smem_to_hbm [#allocation9], 16, %s10, [#allocation5]
    $region57: #{forward.1} parent=1 // pred_fallthru
      _
    // Predicated region
    $region58: #{forward.1} parent=1 // pred_check
      _
    $region59: #{forward.1} parent=1 // pred_check_branch
      %1638 = sbr.rel (0) target = $region61
    $region60: #{forward.1} parent=1 // pred_region
      %s1640 = ssub.s32 32, 32
      %1641 = vsyncadd [#allocation4], %s1640
      %s1643 = sshll.u32 [#allocation10], 4
      %s1644 = int_to_ptr.vmem [resolvable:$true] %s1643
      %1646 = dma.vmem_to_hbm [thread:$0]  %s1644, 32, %s11, [#allocation4]
    $region61: #{forward.1} parent=1 // pred_fallthru
      _
    // Predicated region
    $region62: #{forward.1} parent=1 // pred_check
      _
    $region63: #{forward.1} parent=1 // pred_check_branch
      %1648 = sbr.rel (0) target = $region65
    $region64: #{forward.1} parent=1 // pred_region
      %s1650 = ssub.s32 32, 32
      %1651 = vsyncadd [#allocation12], %s1650
      %s1653 = sshll.u32 [#allocation11], 4
      %s1654 = int_to_ptr.vmem [resolvable:$true] %s1653
      %1656 = dma.vmem_to_hbm [thread:$0]  %s1654, 32, %s12, [#allocation12]
    $region65: #{forward.1} parent=1 // pred_fallthru
      _
    // Predicated region
    $region66: #{forward.1} parent=1 // pred_check
      _
    $region67: #{forward.1} parent=1 // pred_check_branch
      %1658 = sbr.rel (0) target = $region69
    $region68: #{forward.1} parent=1 // pred_region
      %s1660 = ssub.s32 64, 64
      %1661 = vsyncadd [#allocation12], %s1660
      %s1663 = sshll.u32 [#allocation13], 4
      %s1664 = int_to_ptr.vmem [resolvable:$true] %s1663
      %1666 = dma.vmem_to_hbm [thread:$0]  %s1664, 64, %s13, [#allocation12]
    $region69: #{forward.1} parent=1 // pred_fallthru
      _
    // Predicated region
    $region70: #{forward.1} parent=1 // pred_check
      _
    $region71: #{forward.1} parent=1 // pred_check_branch
      %1668 = sbr.rel (0) target = $region73
    $region72: #{forward.1} parent=1 // pred_region
      %1669 = dma.done [#allocation5], 16
    $region73: #{forward.1} parent=1 // pred_fallthru
      _
    // Predicated region
    $region74: #{forward.1} parent=1 // pred_check
      _
    $region75: #{forward.1} parent=1 // pred_check_branch
      %1671 = sbr.rel (0) target = $region77
    $region76: #{forward.1} parent=1 // pred_region
      %1672 = dma.done [#allocation4], 32
    $region77: #{forward.1} parent=1 // pred_fallthru
      _
    // Predicated region
    $region78: #{forward.1} parent=1 // pred_check
      _
    $region79: #{forward.1} parent=1 // pred_check_branch
      %1674 = sbr.rel (0) target = $region81
    $region80: #{forward.1} parent=1 // pred_region
      %1675 = dma.done [#allocation12], 32
    $region81: #{forward.1} parent=1 // pred_fallthru
      _
    // Predicated region
    $region82: #{forward.1} parent=1 // pred_check
      _
    $region83: #{forward.1} parent=1 // pred_check_branch
      %1677 = sbr.rel (0) target = $region85
    $region84: #{forward.1} parent=1 // pred_region
      %1678 = dma.done [#allocation12], 64
    $region85: #{forward.1} parent=1 // pred_fallthru
      _
    %1679 = sfence
    %1680 = vsyncpa [#allocation3], 1
    %1681 = vsyncpa [#allocation7], 1
    %1682 = vsyncpa [#allocation4], 1
    %1683 = vsyncpa [#allocation12], 1
    %1684 = vsyncpa [#allocation5], 1

</llo_original>
